<compile_context>
chip_gen: v7x
topology: tpu7x:2x2x1
jax: 0.10.0
libtpu: 0.0.40
codegen_flags: <defaults>
</compile_context>

<pallas_src>
import functools

import jax
import jax.numpy as jnp
from jax.experimental import pallas as pl
from jax.experimental.pallas import tpu as pltpu


# ----------------------------- fused kernel -------------------------------- #

def _dual_stream_kernel(x_ref, hand_ref,
                        cw1_ref, cb1_ref, cw2_ref, cb2_ref,
                        hw1_ref, hb1_ref, hw2_ref, hb2_ref,
                        w1c_ref, w1h_ref, b1_ref, w2_ref, b2_ref,
                        o_ref):
    f32, bf16 = jnp.float32, jnp.bfloat16

    def conv_relu_pool(x, w_ref, b_ref):
        # x: (T, TB, C) f32 time-major; w_ref: (3C, Cout) bf16 (row = k*C + c); b: (1, Cout)
        T, TBk, C = x.shape
        zrow = jnp.zeros((1, TBk, C), f32)
        x_prev = jnp.concatenate([zrow, x[:T - 1]], axis=0)        # x[t-1] (zero pad)
        x_next = jnp.concatenate([x[1:], zrow], axis=0)            # x[t+1] (zero pad)
        patches = jnp.concatenate([x_prev, x, x_next], axis=2)     # (T, TB, 3C) im2col
        y = jnp.dot(patches.reshape(T * TBk, 3 * C).astype(bf16), w_ref[...],
                    preferred_element_type=f32) + b_ref[...]        # (T*TB, Cout)
        y = jnp.maximum(y, 0.0)                                     # ReLU (f32, VPU)
        Cout = y.shape[1]
        y4 = y.reshape(T // 2, 2, TBk, Cout)                        # pair adjacent time steps
        return jnp.maximum(y4[:, 0], y4[:, 1])                      # MaxPool1d(2) -> (T//2, TB, Cout)

    # ---- both CNN streams fused as one block-diagonal stack ([grf | cop] channels) ----
    x = x_ref[...].astype(f32)                                      # (L, TB, 3)
    p1 = conv_relu_pool(x, cw1_ref, cb1_ref)                        # (L/2, TB, 32)
    p2 = conv_relu_pool(p1, cw2_ref, cb2_ref)                       # (L/4, TB, 64)

    # ---- hand MLP (Dropout == identity at inference) ---------------------------------
    h = hand_ref[...].astype(f32)                                   # (TB, H)
    h = jnp.maximum(jnp.dot(h.astype(bf16), hw1_ref[...],
                            preferred_element_type=f32) + hb1_ref[...], 0.0)
    h = jnp.maximum(jnp.dot(h.astype(bf16), hw2_ref[...],
                            preferred_element_type=f32) + hb2_ref[...], 0.0)   # (TB, 64)

    # ---- classifier: PyTorch channel-major flatten absorbed into w1c's layout --------
    z = jnp.dot(h.astype(bf16), w1h_ref[...], preferred_element_type=f32)      # (TB, 128)
    Lq = p2.shape[0]
    for t in range(Lq):                                             # static, small trip count
        z = z + jnp.dot(p2[t].astype(bf16), w1c_ref[t], preferred_element_type=f32)
    z = jnp.maximum(z + b1_ref[...], 0.0)                           # (TB, 128)
    logits = jnp.dot(z.astype(bf16), w2_ref[...],
                     preferred_element_type=f32) + b2_ref[...]      # (TB, 2)
    o_ref[...] = logits.astype(o_ref.dtype)


# ----------------------------- wrapper -------------------------------------- #

def dual_stream_forward(params, grf, cop, hand):
    """grf: (B, 1, L), cop: (B, 2, L) [PyTorch NCL]; hand: (B, H) -> logits (B, 2)."""
    B, _, L = grf.shape
    assert L % 4 == 0, "input_length must be a multiple of 4 (two MaxPool1d(2) stages)"
    H = hand.shape[1]
    L4 = L // 4

    # Merge streams + go time-major/channel-last once in XLA (cheap), outside the kernel.
    x = jnp.transpose(jnp.concatenate([grf, cop], axis=1), (2, 0, 1))   # (L, B, 3)

    # Batch tile: multiple of 8 (sublane aligned) so in-kernel reshapes are layout no-ops;
    # capped at 256 (MXU row tile on v6e/v7x, keeps per-step VMEM a few MB on v7x's 64 MiB).
    TB = 256 if B > 256 else -(-B // 8) * 8
    B_pad = -(-B // TB) * TB
    if B_pad != B:
        x = jnp.pad(x, ((0, 0), (0, B_pad - B), (0, 0)))
        hand = jnp.pad(hand, ((0, B_pad - B), (0, 0)))
    n_steps = B_pad // TB

    weights = (params["cnn_w1"], params["cnn_b1"], params["cnn_w2"], params["cnn_b2"],
               params["hand_w1"], params["hand_b1"], params["hand_w2"], params["hand_b2"],
               params["cls_w1c"], params["cls_w1h"], params["cls_b1"],
               params["cls_w2"], params["cls_b2"])

    def full_spec(a):                                  # whole array resident in VMEM
        return pl.BlockSpec(a.shape, lambda i, _n=a.ndim: (0,) * _n)

    per_sample_flops = 2 * (L * 9 * 32 + (L // 2) * 96 * 64 + L4 * 64 * 128
                            + H * 64 + 64 * 64 + 128 * 2)
    flops = int(B_pad * per_sample_flops)
    bytes_accessed = int(x.size * 4 + hand.size * 4 + B_pad * 2 * 4
                         + sum(int(a.size) * a.dtype.itemsize for a in weights))

    out = pl.pallas_call(
        _dual_stream_kernel,
        out_shape=jax.ShapeDtypeStruct((B_pad, 2), jnp.float32),
        grid=(n_steps,),
        in_specs=[
            pl.BlockSpec((L, TB, 3), lambda i: (0, i, 0)),
            pl.BlockSpec((TB, H), lambda i: (i, 0)),
        ] + [full_spec(a) for a in weights],
        out_specs=pl.BlockSpec((TB, 2), lambda i: (i, 0)),
        compiler_params=pltpu.CompilerParams(dimension_semantics=("parallel",)),
        cost_estimate=pl.CostEstimate(flops=flops, transcendentals=0,
                                      bytes_accessed=bytes_accessed),
    )(x, hand, *weights)
    return out[:B]


# ----------------------------- params --------------------------------------- #

def _init_torch_layout_params(key, hand_feat_dim, input_length):
    """Draw parameters exactly in PyTorch layouts (Kaiming-uniform-style bounds)."""
    L4 = input_length // 4
    keys = jax.random.split(key, 16)

    def unif(k, shape, fan_in):
        b = 1.0 / jnp.sqrt(jnp.float32(fan_in))
        return jax.random.uniform(k, shape, jnp.float32, -b, b)

    feat = 32 * L4 * 2 + 64
    return {
        "grf_conv1_w": unif(keys[0], (16, 1, 3), 3),    "grf_conv1_b": unif(keys[1], (16,), 3),
        "grf_conv2_w": unif(keys[2], (32, 16, 3), 48),  "grf_conv2_b": unif(keys[3], (32,), 48),
        "cop_conv1_w": unif(keys[4], (16, 2, 3), 6),    "cop_conv1_b": unif(keys[5], (16,), 6),
        "cop_conv2_w": unif(keys[6], (32, 16, 3), 48),  "cop_conv2_b": unif(keys[7], (32,), 48),
        "hand_w1": unif(keys[8], (64, hand_feat_dim), hand_feat_dim),
        "hand_b1": unif(keys[9], (64,), hand_feat_dim),
        "hand_w2": unif(keys[10], (64, 64), 64),        "hand_b2": unif(keys[11], (64,), 64),
        "cls_w1": unif(keys[12], (128, feat), feat),    "cls_b1": unif(keys[13], (128,), feat),
        "cls_w2": unif(keys[14], (2, 128), 128),        "cls_b2": unif(keys[15], (2,), 128),
    }


def _convert_torch_params(tp, input_length):
    """PyTorch-layout params -> fused kernel params (pure relayout; only numeric change is
    the bf16 cast of matmul weights)."""
    L4 = input_length // 4
    bf16 = jnp.bfloat16

    def conv_block(w_pt):                        # (Cout, Cin, 3) -> (3, Cin, Cout) [k, c, co]
        return jnp.transpose(w_pt, (2, 1, 0))

    # stage 1: input channels [grf(1) | cop(2)], outputs [grf 16 | cop 16], block-diagonal
    w1 = jnp.zeros((3, 3, 32), jnp.float32)
    w1 = w1.at[:, 0:1, 0:16].set(conv_block(tp["grf_conv1_w"]))
    w1 = w1.at[:, 1:3, 16:32].set(conv_block(tp["cop_conv1_w"]))
    b1 = jnp.concatenate([tp["grf_conv1_b"], tp["cop_conv1_b"]])[None, :]      # (1, 32)

    # stage 2: input channels [grf 16 | cop 16], outputs [grf 32 | cop 32]
    w2 = jnp.zeros((3, 32, 64), jnp.float32)
    w2 = w2.at[:, 0:16, 0:32].set(conv_block(tp["grf_conv2_w"]))
    w2 = w2.at[:, 16:32, 32:64].set(conv_block(tp["cop_conv2_w"]))
    b2 = jnp.concatenate([tp["grf_conv2_b"], tp["cop_conv2_b"]])[None, :]      # (1, 64)

    # classifier W1: PyTorch column order is [grf flat (c*L4+t) | cop flat | hand];
    # the kernel contracts p2[t, :, c'] (c' in [grf 32 | cop 32]) with w1c[t, c', :].
    Fg = 32 * L4
    w1t = tp["cls_w1"].T                                                       # (2*Fg+64, 128)
    grf_rows = w1t[:Fg].reshape(32, L4, 128)
    cop_rows = w1t[Fg:2 * Fg].reshape(32, L4, 128)
    conv_rows = jnp.concatenate([grf_rows, cop_rows], axis=0)                  # (64, L4, 128)
    cls_w1c = jnp.transpose(conv_rows, (1, 0, 2))                              # (L4, 64, 128)
    cls_w1h = w1t[2 * Fg:]                                                     # (64, 128)

    return {
        "cnn_w1": w1.reshape(9, 32).astype(bf16),      "cnn_b1": b1,
        "cnn_w2": w2.reshape(96, 64).astype(bf16),     "cnn_b2": b2,
        "hand_w1": tp["hand_w1"].T.astype(bf16),       "hand_b1": tp["hand_b1"][None, :],
        "hand_w2": tp["hand_w2"].T.astype(bf16),       "hand_b2": tp["hand_b2"][None, :],
        "cls_w1c": cls_w1c.astype(bf16),
        "cls_w1h": cls_w1h.astype(bf16),               "cls_b1": tp["cls_b1"][None, :],
        "cls_w2": tp["cls_w2"].T.astype(bf16),         "cls_b2": tp["cls_b2"][None, :],
    }


def init_params(key, hand_feat_dim, input_length):
    tp = _init_torch_layout_params(key, hand_feat_dim, input_length)
    return _convert_torch_params(tp, input_length)


# ----------------------------- main ------------------------------------------ #

if __name__ == "__main__":
    B, L, HAND = 2, 16, 8          # small shapes: input_length=16, hand_feat_dim=8
    key = jax.random.PRNGKey(0)
    kp, kg, kc, kh = jax.random.split(key, 4)

    params = init_params(kp, hand_feat_dim=HAND, input_length=L)
    grf = jax.random.normal(kg, (B, 1, L), jnp.float32)
    cop = jax.random.normal(kc, (B, 2, L), jnp.float32)
    hand = jax.random.normal(kh, (B, HAND), jnp.float32)

    fwd = jax.jit(functools.partial(dual_stream_forward, params))
    out = fwd(grf, cop, hand)
    jax.block_until_ready(out)
    assert out.shape == (B, 2) and out.dtype == jnp.float32
    print("KERNEL_OK")
</pallas_src>

<mosaic_0001>
module attributes {stable_mosaic.version = 11 : i64} {
  func.func @_dual_stream_kernel(%arg0: i32, %arg1: memref<16x8x3xf32, #tpu.memory_space<vmem>>, %arg2: memref<8x8xf32, #tpu.memory_space<vmem>>, %arg3: memref<9x32xbf16, #tpu.memory_space<vmem>>, %arg4: memref<1x32xf32, #tpu.memory_space<vmem>>, %arg5: memref<96x64xbf16, #tpu.memory_space<vmem>>, %arg6: memref<1x64xf32, #tpu.memory_space<vmem>>, %arg7: memref<8x64xbf16, #tpu.memory_space<vmem>>, %arg8: memref<1x64xf32, #tpu.memory_space<vmem>>, %arg9: memref<64x64xbf16, #tpu.memory_space<vmem>>, %arg10: memref<1x64xf32, #tpu.memory_space<vmem>>, %arg11: memref<4x64x128xbf16, #tpu.memory_space<vmem>>, %arg12: memref<64x128xbf16, #tpu.memory_space<vmem>>, %arg13: memref<1x128xf32, #tpu.memory_space<vmem>>, %arg14: memref<128x2xbf16, #tpu.memory_space<vmem>>, %arg15: memref<1x2xf32, #tpu.memory_space<vmem>>, %arg16: memref<8x2xf32, #tpu.memory_space<vmem>>) attributes {dimension_semantics = [#tpu.dimension_semantics<parallel>], iteration_bounds = array<i64: 1>, scalar_prefetch = 0 : i64, scratch_operands = 0 : i64, tpu.core_type = #tpu.core_type<tc>, window_params = [{transform_indices = @transform_0, window_bounds = array<i64: 16, 8, 3>}, {transform_indices = @transform_1, window_bounds = array<i64: 8, 8>}, {pipeline_mode = #tpu.pipeline_mode<synchronous>, transform_indices = @transform_2, window_bounds = array<i64: 9, 32>}, {pipeline_mode = #tpu.pipeline_mode<synchronous>, transform_indices = @transform_3, window_bounds = array<i64: 1, 32>}, {pipeline_mode = #tpu.pipeline_mode<synchronous>, transform_indices = @transform_4, window_bounds = array<i64: 96, 64>}, {pipeline_mode = #tpu.pipeline_mode<synchronous>, transform_indices = @transform_5, window_bounds = array<i64: 1, 64>}, {pipeline_mode = #tpu.pipeline_mode<synchronous>, transform_indices = @transform_6, window_bounds = array<i64: 8, 64>}, {pipeline_mode = #tpu.pipeline_mode<synchronous>, transform_indices = @transform_7, window_bounds = array<i64: 1, 64>}, {pipeline_mode = #tpu.pipeline_mode<synchronous>, transform_indices = @transform_8, window_bounds = array<i64: 64, 64>}, {pipeline_mode = #tpu.pipeline_mode<synchronous>, transform_indices = @transform_9, window_bounds = array<i64: 1, 64>}, {pipeline_mode = #tpu.pipeline_mode<synchronous>, transform_indices = @transform_10, window_bounds = array<i64: 4, 64, 128>}, {pipeline_mode = #tpu.pipeline_mode<synchronous>, transform_indices = @transform_11, window_bounds = array<i64: 64, 128>}, {pipeline_mode = #tpu.pipeline_mode<synchronous>, transform_indices = @transform_12, window_bounds = array<i64: 1, 128>}, {pipeline_mode = #tpu.pipeline_mode<synchronous>, transform_indices = @transform_13, window_bounds = array<i64: 128, 2>}, {pipeline_mode = #tpu.pipeline_mode<synchronous>, transform_indices = @transform_14, window_bounds = array<i64: 1, 2>}, {transform_indices = @transform_15, window_bounds = array<i64: 8, 2>}]} {
    %c0 = arith.constant 0 : index
    %c0_0 = arith.constant 0 : index
    %c0_1 = arith.constant 0 : index
    %0 = vector.load %arg1[%c0, %c0_0, %c0_1] : memref<16x8x3xf32, #tpu.memory_space<vmem>>, vector<16x8x3xf32>
    %cst = arith.constant 0.000000e+00 : f32
    %1 = vector.broadcast %cst : f32 to vector<1x8x3xf32>
    %2 = vector.extract_strided_slice %0 {offsets = [0, 0, 0], sizes = [15, 8, 3], strides = [1, 1, 1]} : vector<16x8x3xf32> to vector<15x8x3xf32>
    %3 = tpu.concatenate %1, %2 in 0 : vector<1x8x3xf32>, vector<15x8x3xf32> -> vector<16x8x3xf32>
    %4 = vector.extract_strided_slice %0 {offsets = [1, 0, 0], sizes = [15, 8, 3], strides = [1, 1, 1]} : vector<16x8x3xf32> to vector<15x8x3xf32>
    %5 = tpu.concatenate %4, %1 in 0 : vector<15x8x3xf32>, vector<1x8x3xf32> -> vector<16x8x3xf32>
    %6 = tpu.concatenate %3, %0, %5 in 2 : vector<16x8x3xf32>, vector<16x8x3xf32>, vector<16x8x3xf32> -> vector<16x8x9xf32>
    %7 = vector.shape_cast %6 : vector<16x8x9xf32> to vector<128x9xf32>
    %8 = arith.truncf %7 : vector<128x9xf32> to vector<128x9xbf16>
    %c0_2 = arith.constant 0 : index
    %c0_3 = arith.constant 0 : index
    %9 = vector.load %arg3[%c0_2, %c0_3] : memref<9x32xbf16, #tpu.memory_space<vmem>>, vector<9x32xbf16>
    %cst_4 = arith.constant dense<0.000000e+00> : vector<128x32xf32>
    %10 = tpu.matmul %8, %9, %cst_4 {dimension_numbers = #tpu.dot_dimension_numbers<[1], [0], [0], [1], [0, 0, 1, 1], [], []>} : vector<128x9xbf16>, vector<9x32xbf16>, vector<128x32xf32> -> vector<128x32xf32>
    %c0_5 = arith.constant 0 : index
    %c0_6 = arith.constant 0 : index
    %11 = vector.load %arg4[%c0_5, %c0_6] : memref<1x32xf32, #tpu.memory_space<vmem>>, vector<1x32xf32>
    %12 = vector.broadcast %11 : vector<1x32xf32> to vector<128x32xf32>
    %13 = arith.addf %10, %12 : vector<128x32xf32>
    %cst_7 = arith.constant 0.000000e+00 : f32
    %14 = vector.broadcast %cst_7 : f32 to vector<128x32xf32>
    %15 = arith.maximumf %13, %14 : vector<128x32xf32>
    %16 = vector.shape_cast %15 : vector<128x32xf32> to vector<8x2x8x32xf32>
    %17 = vector.extract_strided_slice %16 {offsets = [0, 0, 0, 0], sizes = [8, 1, 8, 32], strides = [1, 1, 1, 1]} : vector<8x2x8x32xf32> to vector<8x1x8x32xf32>
    %18 = vector.shape_cast %17 : vector<8x1x8x32xf32> to vector<8x8x32xf32>
    %19 = vector.extract_strided_slice %16 {offsets = [0, 1, 0, 0], sizes = [8, 1, 8, 32], strides = [1, 1, 1, 1]} : vector<8x2x8x32xf32> to vector<8x1x8x32xf32>
    %20 = vector.shape_cast %19 : vector<8x1x8x32xf32> to vector<8x8x32xf32>
    %21 = arith.maximumf %18, %20 : vector<8x8x32xf32>
    %cst_8 = arith.constant 0.000000e+00 : f32
    %22 = vector.broadcast %cst_8 : f32 to vector<1x8x32xf32>
    %23 = vector.extract_strided_slice %21 {offsets = [0, 0, 0], sizes = [7, 8, 32], strides = [1, 1, 1]} : vector<8x8x32xf32> to vector<7x8x32xf32>
    %24 = tpu.concatenate %22, %23 in 0 : vector<1x8x32xf32>, vector<7x8x32xf32> -> vector<8x8x32xf32>
    %25 = vector.extract_strided_slice %21 {offsets = [1, 0, 0], sizes = [7, 8, 32], strides = [1, 1, 1]} : vector<8x8x32xf32> to vector<7x8x32xf32>
    %26 = tpu.concatenate %25, %22 in 0 : vector<7x8x32xf32>, vector<1x8x32xf32> -> vector<8x8x32xf32>
    %27 = tpu.concatenate %24, %21, %26 in 2 : vector<8x8x32xf32>, vector<8x8x32xf32>, vector<8x8x32xf32> -> vector<8x8x96xf32>
    %28 = vector.shape_cast %27 : vector<8x8x96xf32> to vector<64x96xf32>
    %29 = arith.truncf %28 : vector<64x96xf32> to vector<64x96xbf16>
    %c0_9 = arith.constant 0 : index
    %c0_10 = arith.constant 0 : index
    %30 = vector.load %arg5[%c0_9, %c0_10] : memref<96x64xbf16, #tpu.memory_space<vmem>>, vector<96x64xbf16>
    %cst_11 = arith.constant dense<0.000000e+00> : vector<64x64xf32>
    %31 = tpu.matmul %29, %30, %cst_11 {dimension_numbers = #tpu.dot_dimension_numbers<[1], [0], [0], [1], [0, 0, 1, 1], [], []>} : vector<64x96xbf16>, vector<96x64xbf16>, vector<64x64xf32> -> vector<64x64xf32>
    %c0_12 = arith.constant 0 : index
    %c0_13 = arith.constant 0 : index
    %32 = vector.load %arg6[%c0_12, %c0_13] : memref<1x64xf32, #tpu.memory_space<vmem>>, vector<1x64xf32>
    %33 = vector.broadcast %32 : vector<1x64xf32> to vector<64x64xf32>
    %34 = arith.addf %31, %33 : vector<64x64xf32>
    %cst_14 = arith.constant 0.000000e+00 : f32
    %35 = vector.broadcast %cst_14 : f32 to vector<64x64xf32>
    %36 = arith.maximumf %34, %35 : vector<64x64xf32>
    %37 = vector.shape_cast %36 : vector<64x64xf32> to vector<4x2x8x64xf32>
    %38 = vector.extract_strided_slice %37 {offsets = [0, 0, 0, 0], sizes = [4, 1, 8, 64], strides = [1, 1, 1, 1]} : vector<4x2x8x64xf32> to vector<4x1x8x64xf32>
    %39 = vector.shape_cast %38 : vector<4x1x8x64xf32> to vector<4x8x64xf32>
    %40 = vector.extract_strided_slice %37 {offsets = [0, 1, 0, 0], sizes = [4, 1, 8, 64], strides = [1, 1, 1, 1]} : vector<4x2x8x64xf32> to vector<4x1x8x64xf32>
    %41 = vector.shape_cast %40 : vector<4x1x8x64xf32> to vector<4x8x64xf32>
    %42 = arith.maximumf %39, %41 : vector<4x8x64xf32>
    %c0_15 = arith.constant 0 : index
    %c0_16 = arith.constant 0 : index
    %43 = vector.load %arg2[%c0_15, %c0_16] : memref<8x8xf32, #tpu.memory_space<vmem>>, vector<8x8xf32>
    %44 = arith.truncf %43 : vector<8x8xf32> to vector<8x8xbf16>
    %c0_17 = arith.constant 0 : index
    %c0_18 = arith.constant 0 : index
    %45 = vector.load %arg7[%c0_17, %c0_18] : memref<8x64xbf16, #tpu.memory_space<vmem>>, vector<8x64xbf16>
    %cst_19 = arith.constant dense<0.000000e+00> : vector<8x64xf32>
    %46 = tpu.matmul %44, %45, %cst_19 {dimension_numbers = #tpu.dot_dimension_numbers<[1], [0], [0], [1], [0, 0, 1, 1], [], []>} : vector<8x8xbf16>, vector<8x64xbf16>, vector<8x64xf32> -> vector<8x64xf32>
    %c0_20 = arith.constant 0 : index
    %c0_21 = arith.constant 0 : index
    %47 = vector.load %arg8[%c0_20, %c0_21] : memref<1x64xf32, #tpu.memory_space<vmem>>, vector<1x64xf32>
    %48 = vector.broadcast %47 : vector<1x64xf32> to vector<8x64xf32>
    %49 = arith.addf %46, %48 : vector<8x64xf32>
    %cst_22 = arith.constant 0.000000e+00 : f32
    %50 = vector.broadcast %cst_22 : f32 to vector<8x64xf32>
    %51 = arith.maximumf %49, %50 : vector<8x64xf32>
    %52 = arith.truncf %51 : vector<8x64xf32> to vector<8x64xbf16>
    %c0_23 = arith.constant 0 : index
    %c0_24 = arith.constant 0 : index
    %53 = vector.load %arg9[%c0_23, %c0_24] : memref<64x64xbf16, #tpu.memory_space<vmem>>, vector<64x64xbf16>
    %cst_25 = arith.constant dense<0.000000e+00> : vector<8x64xf32>
    %54 = tpu.matmul %52, %53, %cst_25 {dimension_numbers = #tpu.dot_dimension_numbers<[1], [0], [0], [1], [0, 0, 1, 1], [], []>} : vector<8x64xbf16>, vector<64x64xbf16>, vector<8x64xf32> -> vector<8x64xf32>
    %c0_26 = arith.constant 0 : index
    %c0_27 = arith.constant 0 : index
    %55 = vector.load %arg10[%c0_26, %c0_27] : memref<1x64xf32, #tpu.memory_space<vmem>>, vector<1x64xf32>
    %56 = vector.broadcast %55 : vector<1x64xf32> to vector<8x64xf32>
    %57 = arith.addf %54, %56 : vector<8x64xf32>
    %cst_28 = arith.constant 0.000000e+00 : f32
    %58 = vector.broadcast %cst_28 : f32 to vector<8x64xf32>
    %59 = arith.maximumf %57, %58 : vector<8x64xf32>
    %60 = arith.truncf %59 : vector<8x64xf32> to vector<8x64xbf16>
    %c0_29 = arith.constant 0 : index
    %c0_30 = arith.constant 0 : index
    %61 = vector.load %arg12[%c0_29, %c0_30] : memref<64x128xbf16, #tpu.memory_space<vmem>>, vector<64x128xbf16>
    %cst_31 = arith.constant dense<0.000000e+00> : vector<8x128xf32>
    %62 = tpu.matmul %60, %61, %cst_31 {dimension_numbers = #tpu.dot_dimension_numbers<[1], [0], [0], [1], [0, 0, 1, 1], [], []>} : vector<8x64xbf16>, vector<64x128xbf16>, vector<8x128xf32> -> vector<8x128xf32>
    %63 = vector.extract_strided_slice %42 {offsets = [0, 0, 0], sizes = [1, 8, 64], strides = [1, 1, 1]} : vector<4x8x64xf32> to vector<1x8x64xf32>
    %64 = vector.shape_cast %63 : vector<1x8x64xf32> to vector<8x64xf32>
    %65 = arith.truncf %64 : vector<8x64xf32> to vector<8x64xbf16>
    %c0_32 = arith.constant 0 : index
    %c0_33 = arith.constant 0 : index
    %c0_34 = arith.constant 0 : index
    %66 = vector.load %arg11[%c0_32, %c0_33, %c0_34] : memref<4x64x128xbf16, #tpu.memory_space<vmem>>, vector<1x64x128xbf16>
    %67 = vector.shape_cast %66 : vector<1x64x128xbf16> to vector<64x128xbf16>
    %cst_35 = arith.constant dense<0.000000e+00> : vector<8x128xf32>
    %68 = tpu.matmul %65, %67, %cst_35 {dimension_numbers = #tpu.dot_dimension_numbers<[1], [0], [0], [1], [0, 0, 1, 1], [], []>} : vector<8x64xbf16>, vector<64x128xbf16>, vector<8x128xf32> -> vector<8x128xf32>
    %69 = arith.addf %62, %68 : vector<8x128xf32>
    %70 = vector.extract_strided_slice %42 {offsets = [1, 0, 0], sizes = [1, 8, 64], strides = [1, 1, 1]} : vector<4x8x64xf32> to vector<1x8x64xf32>
    %71 = vector.shape_cast %70 : vector<1x8x64xf32> to vector<8x64xf32>
    %72 = arith.truncf %71 : vector<8x64xf32> to vector<8x64xbf16>
    %c1 = arith.constant 1 : index
    %c0_36 = arith.constant 0 : index
    %c0_37 = arith.constant 0 : index
    %73 = vector.load %arg11[%c1, %c0_36, %c0_37] : memref<4x64x128xbf16, #tpu.memory_space<vmem>>, vector<1x64x128xbf16>
    %74 = vector.shape_cast %73 : vector<1x64x128xbf16> to vector<64x128xbf16>
    %cst_38 = arith.constant dense<0.000000e+00> : vector<8x128xf32>
    %75 = tpu.matmul %72, %74, %cst_38 {dimension_numbers = #tpu.dot_dimension_numbers<[1], [0], [0], [1], [0, 0, 1, 1], [], []>} : vector<8x64xbf16>, vector<64x128xbf16>, vector<8x128xf32> -> vector<8x128xf32>
    %76 = arith.addf %69, %75 : vector<8x128xf32>
    %77 = vector.extract_strided_slice %42 {offsets = [2, 0, 0], sizes = [1, 8, 64], strides = [1, 1, 1]} : vector<4x8x64xf32> to vector<1x8x64xf32>
    %78 = vector.shape_cast %77 : vector<1x8x64xf32> to vector<8x64xf32>
    %79 = arith.truncf %78 : vector<8x64xf32> to vector<8x64xbf16>
    %c2 = arith.constant 2 : index
    %c0_39 = arith.constant 0 : index
    %c0_40 = arith.constant 0 : index
    %80 = vector.load %arg11[%c2, %c0_39, %c0_40] : memref<4x64x128xbf16, #tpu.memory_space<vmem>>, vector<1x64x128xbf16>
    %81 = vector.shape_cast %80 : vector<1x64x128xbf16> to vector<64x128xbf16>
    %cst_41 = arith.constant dense<0.000000e+00> : vector<8x128xf32>
    %82 = tpu.matmul %79, %81, %cst_41 {dimension_numbers = #tpu.dot_dimension_numbers<[1], [0], [0], [1], [0, 0, 1, 1], [], []>} : vector<8x64xbf16>, vector<64x128xbf16>, vector<8x128xf32> -> vector<8x128xf32>
    %83 = arith.addf %76, %82 : vector<8x128xf32>
    %84 = vector.extract_strided_slice %42 {offsets = [3, 0, 0], sizes = [1, 8, 64], strides = [1, 1, 1]} : vector<4x8x64xf32> to vector<1x8x64xf32>
    %85 = vector.shape_cast %84 : vector<1x8x64xf32> to vector<8x64xf32>
    %86 = arith.truncf %85 : vector<8x64xf32> to vector<8x64xbf16>
    %c3 = arith.constant 3 : index
    %c0_42 = arith.constant 0 : index
    %c0_43 = arith.constant 0 : index
    %87 = vector.load %arg11[%c3, %c0_42, %c0_43] : memref<4x64x128xbf16, #tpu.memory_space<vmem>>, vector<1x64x128xbf16>
    %88 = vector.shape_cast %87 : vector<1x64x128xbf16> to vector<64x128xbf16>
    %cst_44 = arith.constant dense<0.000000e+00> : vector<8x128xf32>
    %89 = tpu.matmul %86, %88, %cst_44 {dimension_numbers = #tpu.dot_dimension_numbers<[1], [0], [0], [1], [0, 0, 1, 1], [], []>} : vector<8x64xbf16>, vector<64x128xbf16>, vector<8x128xf32> -> vector<8x128xf32>
    %90 = arith.addf %83, %89 : vector<8x128xf32>
    %c0_45 = arith.constant 0 : index
    %c0_46 = arith.constant 0 : index
    %91 = vector.load %arg13[%c0_45, %c0_46] : memref<1x128xf32, #tpu.memory_space<vmem>>, vector<1x128xf32>
    %92 = vector.broadcast %91 : vector<1x128xf32> to vector<8x128xf32>
    %93 = arith.addf %90, %92 : vector<8x128xf32>
    %cst_47 = arith.constant 0.000000e+00 : f32
    %94 = vector.broadcast %cst_47 : f32 to vector<8x128xf32>
    %95 = arith.maximumf %93, %94 : vector<8x128xf32>
    %96 = arith.truncf %95 : vector<8x128xf32> to vector<8x128xbf16>
    %c0_48 = arith.constant 0 : index
    %c0_49 = arith.constant 0 : index
    %97 = vector.load %arg14[%c0_48, %c0_49] : memref<128x2xbf16, #tpu.memory_space<vmem>>, vector<128x2xbf16>
    %cst_50 = arith.constant dense<0.000000e+00> : vector<8x2xf32>
    %98 = tpu.matmul %96, %97, %cst_50 {dimension_numbers = #tpu.dot_dimension_numbers<[1], [0], [0], [1], [0, 0, 1, 1], [], []>} : vector<8x128xbf16>, vector<128x2xbf16>, vector<8x2xf32> -> vector<8x2xf32>
    %c0_51 = arith.constant 0 : index
    %c0_52 = arith.constant 0 : index
    %99 = vector.load %arg15[%c0_51, %c0_52] : memref<1x2xf32, #tpu.memory_space<vmem>>, vector<1x2xf32>
    %100 = vector.broadcast %99 : vector<1x2xf32> to vector<8x2xf32>
    %101 = arith.addf %98, %100 : vector<8x2xf32>
    %c0_53 = arith.constant 0 : index
    %c0_54 = arith.constant 0 : index
    %102 = vector.load %arg16[%c0_53, %c0_54] : memref<8x2xf32, #tpu.memory_space<vmem>>, vector<8x2xf32>
    tpu.vector_store %arg16[%c0_53, %c0_54], %101 {strides = array<i32>} : memref<8x2xf32, #tpu.memory_space<vmem>>, vector<8x2xf32>,
    return
  }
  func.func @transform_0(%arg0: i32) -> (i32, i32, i32) {
    %c0_i32 = arith.constant 0 : i32
    %c0_i32_0 = arith.constant 0 : i32
    %c0_i32_1 = arith.constant 0 : i32
    return %c0_i32, %arg0, %c0_i32_0 : i32, i32, i32
  }
  func.func @transform_1(%arg0: i32) -> (i32, i32) {
    %c0_i32 = arith.constant 0 : i32
    %c0_i32_0 = arith.constant 0 : i32
    return %arg0, %c0_i32 : i32, i32
  }
  func.func @transform_2(%arg0: i32) -> (i32, i32) {
    %c0_i32 = arith.constant 0 : i32
    %c0_i32_0 = arith.constant 0 : i32
    %c0_i32_1 = arith.constant 0 : i32
    return %c0_i32, %c0_i32_0 : i32, i32
  }
  func.func @transform_3(%arg0: i32) -> (i32, i32) {
    %c0_i32 = arith.constant 0 : i32
    %c0_i32_0 = arith.constant 0 : i32
    %c0_i32_1 = arith.constant 0 : i32
    return %c0_i32, %c0_i32_0 : i32, i32
  }
  func.func @transform_4(%arg0: i32) -> (i32, i32) {
    %c0_i32 = arith.constant 0 : i32
    %c0_i32_0 = arith.constant 0 : i32
    %c0_i32_1 = arith.constant 0 : i32
    return %c0_i32, %c0_i32_0 : i32, i32
  }
  func.func @transform_5(%arg0: i32) -> (i32, i32) {
    %c0_i32 = arith.constant 0 : i32
    %c0_i32_0 = arith.constant 0 : i32
    %c0_i32_1 = arith.constant 0 : i32
    return %c0_i32, %c0_i32_0 : i32, i32
  }
  func.func @transform_6(%arg0: i32) -> (i32, i32) {
    %c0_i32 = arith.constant 0 : i32
    %c0_i32_0 = arith.constant 0 : i32
    %c0_i32_1 = arith.constant 0 : i32
    return %c0_i32, %c0_i32_0 : i32, i32
  }
  func.func @transform_7(%arg0: i32) -> (i32, i32) {
    %c0_i32 = arith.constant 0 : i32
    %c0_i32_0 = arith.constant 0 : i32
    %c0_i32_1 = arith.constant 0 : i32
    return %c0_i32, %c0_i32_0 : i32, i32
  }
  func.func @transform_8(%arg0: i32) -> (i32, i32) {
    %c0_i32 = arith.constant 0 : i32
    %c0_i32_0 = arith.constant 0 : i32
    %c0_i32_1 = arith.constant 0 : i32
    return %c0_i32, %c0_i32_0 : i32, i32
  }
  func.func @transform_9(%arg0: i32) -> (i32, i32) {
    %c0_i32 = arith.constant 0 : i32
    %c0_i32_0 = arith.constant 0 : i32
    %c0_i32_1 = arith.constant 0 : i32
    return %c0_i32, %c0_i32_0 : i32, i32
  }
  func.func @transform_10(%arg0: i32) -> (i32, i32, i32) {
    %c0_i32 = arith.constant 0 : i32
    %c0_i32_0 = arith.constant 0 : i32
    %c0_i32_1 = arith.constant 0 : i32
    %c0_i32_2 = arith.constant 0 : i32
    return %c0_i32, %c0_i32_0, %c0_i32_1 : i32, i32, i32
  }
  func.func @transform_11(%arg0: i32) -> (i32, i32) {
    %c0_i32 = arith.constant 0 : i32
    %c0_i32_0 = arith.constant 0 : i32
    %c0_i32_1 = arith.constant 0 : i32
    return %c0_i32, %c0_i32_0 : i32, i32
  }
  func.func @transform_12(%arg0: i32) -> (i32, i32) {
    %c0_i32 = arith.constant 0 : i32
    %c0_i32_0 = arith.constant 0 : i32
    %c0_i32_1 = arith.constant 0 : i32
    return %c0_i32, %c0_i32_0 : i32, i32
  }
  func.func @transform_13(%arg0: i32) -> (i32, i32) {
    %c0_i32 = arith.constant 0 : i32
    %c0_i32_0 = arith.constant 0 : i32
    %c0_i32_1 = arith.constant 0 : i32
    return %c0_i32, %c0_i32_0 : i32, i32
  }
  func.func @transform_14(%arg0: i32) -> (i32, i32) {
    %c0_i32 = arith.constant 0 : i32
    %c0_i32_0 = arith.constant 0 : i32
    %c0_i32_1 = arith.constant 0 : i32
    return %c0_i32, %c0_i32_0 : i32, i32
  }
  func.func @transform_15(%arg0: i32) -> (i32, i32) {
    %c0_i32 = arith.constant 0 : i32
    %c0_i32_0 = arith.constant 0 : i32
    return %arg0, %c0_i32 : i32, i32
  }
}

</mosaic_0001>

<llo_original>
// kernel: dual_stream_forward.1
$region0: #{dual_stream_forward.1}
  #allocation0 [shape = 'u32[]', space=smem, size = 0x4, offset = 0x4, fixed_abs, tag = 'smem constant byte address 0x4 - core index']
  #allocation1 [shape = 'u32[144,128]{1,0:T(1,128)}', space=vmem, size = 0x12000, scoped, tag = 'internal scratch']
  %s0 = inlined_call_operand.vmem [shape: f32[16,8,3], index: 0, kind: input, shape index: {}]
  %s1 = inlined_call_operand.vmem [shape: f32[8,8], index: 1, kind: input, shape index: {}]
  %s2 = inlined_call_operand.vmem [shape: bf16[9,32], index: 2, kind: input, shape index: {}]
  %s3 = inlined_call_operand.vmem [shape: f32[1,32], index: 3, kind: input, shape index: {}]
  %s4 = inlined_call_operand.vmem [shape: bf16[96,64], index: 4, kind: input, shape index: {}]
  %s5 = inlined_call_operand.vmem [shape: f32[1,64], index: 5, kind: input, shape index: {}]
  %s6 = inlined_call_operand.vmem [shape: bf16[8,64], index: 6, kind: input, shape index: {}]
  %s7 = inlined_call_operand.vmem [shape: f32[1,64], index: 7, kind: input, shape index: {}]
  %s8 = inlined_call_operand.vmem [shape: bf16[64,64], index: 8, kind: input, shape index: {}]
  %s9 = inlined_call_operand.vmem [shape: f32[1,64], index: 9, kind: input, shape index: {}]
  %s10 = inlined_call_operand.vmem [shape: bf16[4,64,128], index: 10, kind: input, shape index: {}]
  %s11 = inlined_call_operand.vmem [shape: bf16[64,128], index: 11, kind: input, shape index: {}]
  %s12 = inlined_call_operand.vmem [shape: f32[1,128], index: 12, kind: input, shape index: {}]
  %s13 = inlined_call_operand.vmem [shape: bf16[128,2], index: 13, kind: input, shape index: {}]
  %s14 = inlined_call_operand.vmem [shape: f32[1,2], index: 14, kind: input, shape index: {}]
  %s15 = inlined_call_operand.vmem [shape: f32[8,2], index: 15, kind: output, shape index: {}]
  %s16 = sld [smem:[#allocation0]]
  $region70: #{dual_stream_forward.1} parent=0
    _
  %s18 = ssub.s32 1, %s16
  %s19 = scalar_select 0, %s18, %s16
  // Predicated region
  $region2: #{dual_stream_forward.1} parent=0 // pred_check
    _
  $region3: #{dual_stream_forward.1} parent=0 // pred_check_branch
    %21 = sbr.rel (0) target = $region5
  $region4: #{dual_stream_forward.1} parent=0 // pred_region
    _
  $region5: #{dual_stream_forward.1} parent=0 // pred_fallthru
    _
  // Predicated region
  $region6: #{dual_stream_forward.1} parent=0 // pred_check
    _
  $region7: #{dual_stream_forward.1} parent=0 // pred_check_branch
    %23 = sbr.rel (0) target = $region9
  $region8: #{dual_stream_forward.1} parent=0 // pred_region
    _
  $region9: #{dual_stream_forward.1} parent=0 // pred_fallthru
    _
  // Predicated region
  $region10: #{dual_stream_forward.1} parent=0 // pred_check
    _
  $region11: #{dual_stream_forward.1} parent=0 // pred_check_branch
    %25 = sbr.rel (0) target = $region13
  $region12: #{dual_stream_forward.1} parent=0 // pred_region
    _
  $region13: #{dual_stream_forward.1} parent=0 // pred_fallthru
    _
  // Predicated region
  $region14: #{dual_stream_forward.1} parent=0 // pred_check
    _
  $region15: #{dual_stream_forward.1} parent=0 // pred_check_branch
    %27 = sbr.rel (0) target = $region17
  $region16: #{dual_stream_forward.1} parent=0 // pred_region
    _
  $region17: #{dual_stream_forward.1} parent=0 // pred_fallthru
    _
  // Predicated region
  $region18: #{dual_stream_forward.1} parent=0 // pred_check
    _
  $region19: #{dual_stream_forward.1} parent=0 // pred_check_branch
    %29 = sbr.rel (0) target = $region21
  $region20: #{dual_stream_forward.1} parent=0 // pred_region
    _
  $region21: #{dual_stream_forward.1} parent=0 // pred_fallthru
    _
  // Predicated region
  $region22: #{dual_stream_forward.1} parent=0 // pred_check
    _
  $region23: #{dual_stream_forward.1} parent=0 // pred_check_branch
    %31 = sbr.rel (0) target = $region25
  $region24: #{dual_stream_forward.1} parent=0 // pred_region
    _
  $region25: #{dual_stream_forward.1} parent=0 // pred_fallthru
    _
  // Predicated region
  $region26: #{dual_stream_forward.1} parent=0 // pred_check
    _
  $region27: #{dual_stream_forward.1} parent=0 // pred_check_branch
    %33 = sbr.rel (0) target = $region29
  $region28: #{dual_stream_forward.1} parent=0 // pred_region
    _
  $region29: #{dual_stream_forward.1} parent=0 // pred_fallthru
    _
  // Predicated region
  $region30: #{dual_stream_forward.1} parent=0 // pred_check
    _
  $region31: #{dual_stream_forward.1} parent=0 // pred_check_branch
    %35 = sbr.rel (0) target = $region33
  $region32: #{dual_stream_forward.1} parent=0 // pred_region
    _
  $region33: #{dual_stream_forward.1} parent=0 // pred_fallthru
    _
  // Predicated region
  $region34: #{dual_stream_forward.1} parent=0 // pred_check
    _
  $region35: #{dual_stream_forward.1} parent=0 // pred_check_branch
    %37 = sbr.rel (0) target = $region37
  $region36: #{dual_stream_forward.1} parent=0 // pred_region
    _
  $region37: #{dual_stream_forward.1} parent=0 // pred_fallthru
    _
  // Predicated region
  $region38: #{dual_stream_forward.1} parent=0 // pred_check
    _
  $region39: #{dual_stream_forward.1} parent=0 // pred_check_branch
    %39 = sbr.rel (0) target = $region41
  $region40: #{dual_stream_forward.1} parent=0 // pred_region
    _
  $region41: #{dual_stream_forward.1} parent=0 // pred_fallthru
    _
  // Predicated region
  $region42: #{dual_stream_forward.1} parent=0 // pred_check
    _
  $region43: #{dual_stream_forward.1} parent=0 // pred_check_branch
    %41 = sbr.rel (0) target = $region45
  $region44: #{dual_stream_forward.1} parent=0 // pred_region
    _
  $region45: #{dual_stream_forward.1} parent=0 // pred_fallthru
    _
  // Predicated region
  $region46: #{dual_stream_forward.1} parent=0 // pred_check
    _
  $region47: #{dual_stream_forward.1} parent=0 // pred_check_branch
    %43 = sbr.rel (0) target = $region49
  $region48: #{dual_stream_forward.1} parent=0 // pred_region
    _
  $region49: #{dual_stream_forward.1} parent=0 // pred_fallthru
    _
  // Predicated region
  $region50: #{dual_stream_forward.1} parent=0 // pred_check
    _
  $region51: #{dual_stream_forward.1} parent=0 // pred_check_branch
    %45 = sbr.rel (0) target = $region53
  $region52: #{dual_stream_forward.1} parent=0 // pred_region
    _
  $region53: #{dual_stream_forward.1} parent=0 // pred_fallthru
    _
  // Predicated region
  $region54: #{dual_stream_forward.1} parent=0 // pred_check
    _
  $region55: #{dual_stream_forward.1} parent=0 // pred_check_branch
    %47 = sbr.rel (0) target = $region57
  $region56: #{dual_stream_forward.1} parent=0 // pred_region
    _
  $region57: #{dual_stream_forward.1} parent=0 // pred_fallthru
    _
  // Predicated region
  $region58: #{dual_stream_forward.1} parent=0 // pred_check
    _
  $region59: #{dual_stream_forward.1} parent=0 // pred_check_branch
    %49 = sbr.rel (0) target = $region61
  $region60: #{dual_stream_forward.1} parent=0 // pred_region
    _
  $region61: #{dual_stream_forward.1} parent=0 // pred_fallthru
    _
  %v51 = vld [vmem:[%s0] sm:$0xff]
  %v52 = vld [vmem:[%s0 + $0x8] sm:$0xff]
  %v53 = vld [vmem:[%s0 + $0x10] sm:$0xff]
  %v54 = vld [vmem:[%s0 + $0x18] sm:$0xff]
  %v55 = vld [vmem:[%s0 + $0x20] sm:$0xff]
  %v56 = vld [vmem:[%s0 + $0x28] sm:$0xff]
  %v57 = vld [vmem:[%s0 + $0x30] sm:$0xff]
  %v58 = vld [vmem:[%s0 + $0x38] sm:$0xff]
  %v59 = vld [vmem:[%s0 + $0x40] sm:$0xff]
  %v60 = vld [vmem:[%s0 + $0x48] sm:$0xff]
  %v61 = vld [vmem:[%s0 + $0x50] sm:$0xff]
  %v62 = vld [vmem:[%s0 + $0x58] sm:$0xff]
  %v63 = vld [vmem:[%s0 + $0x60] sm:$0xff]
  %v64 = vld [vmem:[%s0 + $0x68] sm:$0xff]
  %v65 = vld [vmem:[%s0 + $0x70] sm:$0xff]
  %v66 = vld [vmem:[%s0 + $0x78] sm:$0xff]
  %83 = vrot.lane.b32.xlu0 %v51, 3
  %v84 = vpop.permute.xlu0 %83
  %85 = vrot.lane.b32.xlu0 %v52, 3
  %v86 = vpop.permute.xlu0 %85
  %87 = vrot.lane.b32.xlu0 %v53, 3
  %v88 = vpop.permute.xlu0 %87
  %89 = vrot.lane.b32.xlu0 %v54, 3
  %v90 = vpop.permute.xlu0 %89
  %91 = vrot.lane.b32.xlu0 %v55, 3
  %v92 = vpop.permute.xlu0 %91
  %93 = vrot.lane.b32.xlu0 %v56, 3
  %v94 = vpop.permute.xlu0 %93
  %95 = vrot.lane.b32.xlu0 %v57, 3
  %v96 = vpop.permute.xlu0 %95
  %97 = vrot.lane.b32.xlu0 %v58, 3
  %v98 = vpop.permute.xlu0 %97
  %99 = vrot.lane.b32.xlu0 %v59, 3
  %v100 = vpop.permute.xlu0 %99
  %101 = vrot.lane.b32.xlu0 %v60, 3
  %v102 = vpop.permute.xlu0 %101
  %103 = vrot.lane.b32.xlu0 %v61, 3
  %v104 = vpop.permute.xlu0 %103
  %105 = vrot.lane.b32.xlu0 %v62, 3
  %v106 = vpop.permute.xlu0 %105
  %107 = vrot.lane.b32.xlu0 %v63, 3
  %v108 = vpop.permute.xlu0 %107
  %109 = vrot.lane.b32.xlu0 %v64, 3
  %v110 = vpop.permute.xlu0 %109
  %111 = vrot.lane.b32.xlu0 %v65, 3
  %v112 = vpop.permute.xlu0 %111
  %113 = vrot.lane.b32.xlu0 %v66, 3
  %v114 = vpop.permute.xlu0 %113
  %132 = vrot.lane.b32.xlu0 %v52, 6
  %v133 = vpop.permute.xlu0 %132
  %134 = vrot.lane.b32.xlu0 %v53, 6
  %v135 = vpop.permute.xlu0 %134
  %136 = vrot.lane.b32.xlu0 %v54, 6
  %v137 = vpop.permute.xlu0 %136
  %138 = vrot.lane.b32.xlu0 %v55, 6
  %v139 = vpop.permute.xlu0 %138
  %140 = vrot.lane.b32.xlu0 %v56, 6
  %v141 = vpop.permute.xlu0 %140
  %142 = vrot.lane.b32.xlu0 %v57, 6
  %v143 = vpop.permute.xlu0 %142
  %144 = vrot.lane.b32.xlu0 %v58, 6
  %v145 = vpop.permute.xlu0 %144
  %146 = vrot.lane.b32.xlu0 %v59, 6
  %v147 = vpop.permute.xlu0 %146
  %148 = vrot.lane.b32.xlu0 %v60, 6
  %v149 = vpop.permute.xlu0 %148
  %150 = vrot.lane.b32.xlu0 %v61, 6
  %v151 = vpop.permute.xlu0 %150
  %152 = vrot.lane.b32.xlu0 %v62, 6
  %v153 = vpop.permute.xlu0 %152
  %154 = vrot.lane.b32.xlu0 %v63, 6
  %v155 = vpop.permute.xlu0 %154
  %156 = vrot.lane.b32.xlu0 %v64, 6
  %v157 = vpop.permute.xlu0 %156
  %158 = vrot.lane.b32.xlu0 %v65, 6
  %v159 = vpop.permute.xlu0 %158
  %160 = vrot.lane.b32.xlu0 %v66, 6
  %v161 = vpop.permute.xlu0 %160
  %162 = vrot.lane.b32.xlu0 0.0, 6
  %v163 = vpop.permute.xlu0 %162
  %vm180 = vcmask 23552
  %v181 = vsel %vm180, 0.0, %v84
  %v182 = vsel %vm180, %v51, %v86
  %v183 = vsel %vm180, %v52, %v88
  %v184 = vsel %vm180, %v53, %v90
  %v185 = vsel %vm180, %v54, %v92
  %v186 = vsel %vm180, %v55, %v94
  %v187 = vsel %vm180, %v56, %v96
  %v188 = vsel %vm180, %v57, %v98
  %v189 = vsel %vm180, %v58, %v100
  %v190 = vsel %vm180, %v59, %v102
  %v191 = vsel %vm180, %v60, %v104
  %v192 = vsel %vm180, %v61, %v106
  %v193 = vsel %vm180, %v62, %v108
  %v194 = vsel %vm180, %v63, %v110
  %v195 = vsel %vm180, %v64, %v112
  %v196 = vsel %vm180, %v65, %v114
  %vm197 = vcmask 48128
  %v198 = vsel %vm197, %v181, %v133
  %v199 = vsel %vm197, %v182, %v135
  %v200 = vsel %vm197, %v183, %v137
  %v201 = vsel %vm197, %v184, %v139
  %v202 = vsel %vm197, %v185, %v141
  %v203 = vsel %vm197, %v186, %v143
  %v204 = vsel %vm197, %v187, %v145
  %v205 = vsel %vm197, %v188, %v147
  %v206 = vsel %vm197, %v189, %v149
  %v207 = vsel %vm197, %v190, %v151
  %v208 = vsel %vm197, %v191, %v153
  %v209 = vsel %vm197, %v192, %v155
  %v210 = vsel %vm197, %v193, %v157
  %v211 = vsel %vm197, %v194, %v159
  %v212 = vsel %vm197, %v195, %v161
  %v213 = vsel %vm197, %v196, %v163
  %v214 = vpack.c.bf16 %v199, %v198
  %v215 = vpack.c.bf16 %v201, %v200
  %v216 = vpack.c.bf16 %v203, %v202
  %v217 = vpack.c.bf16 %v205, %v204
  %v218 = vpack.c.bf16 %v207, %v206
  %v219 = vpack.c.bf16 %v209, %v208
  %v220 = vpack.c.bf16 %v211, %v210
  %v221 = vpack.c.bf16 %v213, %v212
  %v222 = vld [vmem:[%s2] sm:$0xf]
  %v223 = vld [vmem:[%s2 + $0x4] sm:$0x1]
  %v224 = vld [vmem:[%s3] sm:$0x1]
  %v226 = vlaneseq
  %v227 = vshrl.u32 %v226, 7
  %v228 = vsub.s32 0, %v227
  %v229 = vrot.slane %v224, %v228
  %v233 = vunpack.c.l.b16 %v222
  %v234 = vunpack.c.l.b16 %v223
  %v235 = vpack.c.b16 %v234, %v233
  %vm236 = vcmask 72704
  %v238 = vsel %vm236, %v214, 0
  %v241 = vsel %vm236, %v215, 0
  %v244 = vsel %vm236, %v216, 0
  %v247 = vsel %vm236, %v217, 0
  %v250 = vsel %vm236, %v218, 0
  %v253 = vsel %vm236, %v219, 0
  %v256 = vsel %vm236, %v220, 0
  %v259 = vsel %vm236, %v221, 0
  %vm261 = vcmask 1043456
  %vm262 = vcmask 1044480
  %v263 = vsel %vm261, 4294967295, 65535
  %v264 = vsel %vm262, %v263, 0
  %v266 = vand.u32 %v235, %v264
  %268 = vmatprep.subr.bf16.mxu0 0
  %269 = vmatpush1.bf16.msra.mxu0 %v266
  %270 = vmatprep.subr.bf16.mxu0 0
  %271 = vmatpush1.bf16.msra.mxu0 0
  %272 = vmatprep.subr.bf16.mxu0 0
  %273 = vmatpush1.bf16.msra.mxu0 0
  %274 = vmatprep.subr.bf16.mxu0 0
  %275 = vmatpush1.bf16.msra.mxu0 0
  %276 = vmatprep.subr.bf16.mxu0 0
  %277 = vmatpush1.bf16.msra.mxu0 0
  %278 = vmatprep.subr.bf16.mxu0 0
  %279 = vmatpush1.bf16.msra.mxu0 0
  %280 = vmatprep.subr.bf16.mxu0 0
  %281 = vmatpush1.bf16.msra.mxu0 0
  %282 = vmatprep.subr.bf16.mxu0 0
  %283 = vmatpush1.bf16.msra.mxu0 0
  %284 = vmatprep.subr.bf16.mxu0 0
  %285 = vmatpush1.bf16.msra.mxu0 0
  %286 = vmatprep.subr.bf16.mxu0 0
  %287 = vmatpush1.bf16.msra.mxu0 0
  %288 = vmatprep.subr.bf16.mxu0 0
  %289 = vmatpush1.bf16.msra.mxu0 0
  %290 = vmatprep.subr.bf16.mxu0 0
  %291 = vmatpush1.bf16.msra.mxu0 0
  %292 = vmatprep.subr.bf16.mxu0 0
  %293 = vmatpush1.bf16.msra.mxu0 0
  %294 = vmatprep.subr.bf16.mxu0 0
  %295 = vmatpush1.bf16.msra.mxu0 0
  %296 = vmatprep.subr.bf16.mxu0 0
  %297 = vmatpush1.bf16.msra.mxu0 0
  %298 = vmatprep.subr.bf16.mxu0 0
  %299 = vmatpush1.bf16.msra.mxu0 0
  %300 = vmatprep.mubr.bf16.mxu0 0
  %301 = vmatmul.mubr.bf16.gmra.mrb[0].mxu0 %v238
  %v302 = vpop.f32.mrb[0].mxu0
  %v303 = vadd.f32 %v229, %v302
  %v304 = vpop.f32.mrb[0].mxu0
  %v305 = vpop.f32.mrb[0].mxu0
  %v306 = vadd.f32 %v229, %v305
  %v307 = vpop.f32.mrb[0].mxu0
  %308 = vmatprep.mubr.bf16.mxu0 0
  %309 = vmatmul.mubr.bf16.gmra.mrb[0].mxu0 %v241
  %v310 = vpop.f32.mrb[0].mxu0
  %v311 = vadd.f32 %v229, %v310
  %v312 = vpop.f32.mrb[0].mxu0
  %v313 = vpop.f32.mrb[0].mxu0
  %v314 = vadd.f32 %v229, %v313
  %v315 = vpop.f32.mrb[0].mxu0
  %316 = vmatprep.mubr.bf16.mxu0 0
  %317 = vmatmul.mubr.bf16.gmra.mrb[0].mxu0 %v244
  %v318 = vpop.f32.mrb[0].mxu0
  %v319 = vadd.f32 %v229, %v318
  %v320 = vpop.f32.mrb[0].mxu0
  %v321 = vpop.f32.mrb[0].mxu0
  %v322 = vadd.f32 %v229, %v321
  %v323 = vpop.f32.mrb[0].mxu0
  %324 = vmatprep.mubr.bf16.mxu0 0
  %325 = vmatmul.mubr.bf16.gmra.mrb[0].mxu0 %v247
  %v326 = vpop.f32.mrb[0].mxu0
  %v327 = vadd.f32 %v229, %v326
  %v328 = vpop.f32.mrb[0].mxu0
  %v329 = vpop.f32.mrb[0].mxu0
  %v330 = vadd.f32 %v229, %v329
  %v331 = vpop.f32.mrb[0].mxu0
  %332 = vmatprep.mubr.bf16.mxu0 0
  %333 = vmatmul.mubr.bf16.gmra.mrb[0].mxu0 %v250
  %v334 = vpop.f32.mrb[0].mxu0
  %v335 = vadd.f32 %v229, %v334
  %v336 = vpop.f32.mrb[0].mxu0
  %v337 = vpop.f32.mrb[0].mxu0
  %v338 = vadd.f32 %v229, %v337
  %v339 = vpop.f32.mrb[0].mxu0
  %340 = vmatprep.mubr.bf16.mxu0 0
  %341 = vmatmul.mubr.bf16.gmra.mrb[0].mxu0 %v253
  %v342 = vpop.f32.mrb[0].mxu0
  %v343 = vadd.f32 %v229, %v342
  %v344 = vpop.f32.mrb[0].mxu0
  %v345 = vpop.f32.mrb[0].mxu0
  %v346 = vadd.f32 %v229, %v345
  %v347 = vpop.f32.mrb[0].mxu0
  %348 = vmatprep.mubr.bf16.mxu0 0
  %349 = vmatmul.mubr.bf16.gmra.mrb[0].mxu0 %v256
  %v350 = vpop.f32.mrb[0].mxu0
  %v351 = vadd.f32 %v229, %v350
  %v352 = vpop.f32.mrb[0].mxu0
  %v353 = vpop.f32.mrb[0].mxu0
  %v354 = vadd.f32 %v229, %v353
  %v355 = vpop.f32.mrb[0].mxu0
  %356 = vmatprep.mubr.bf16.mxu0 0
  %357 = vmatmul.mubr.bf16.gmra.mrb[0].mxu0 %v259
  %v358 = vpop.f32.mrb[0].mxu0
  %v359 = vadd.f32 %v229, %v358
  %v360 = vpop.f32.mrb[0].mxu0
  %v361 = vpop.f32.mrb[0].mxu0
  %v362 = vadd.f32 %v229, %v361
  %v363 = vpop.f32.mrb[0].mxu0
  %364 = vdwg.mxu0
  %v365 = vmax.f32 %v303, 0.0
  %v366 = vmax.f32 %v306, 0.0
  %v367 = vmax.f32 %v311, 0.0
  %v368 = vmax.f32 %v314, 0.0
  %v369 = vmax.f32 %v319, 0.0
  %v370 = vmax.f32 %v322, 0.0
  %v371 = vmax.f32 %v327, 0.0
  %v372 = vmax.f32 %v330, 0.0
  %v373 = vmax.f32 %v335, 0.0
  %v374 = vmax.f32 %v338, 0.0
  %v375 = vmax.f32 %v343, 0.0
  %v376 = vmax.f32 %v346, 0.0
  %v377 = vmax.f32 %v351, 0.0
  %v378 = vmax.f32 %v354, 0.0
  %v379 = vmax.f32 %v359, 0.0
  %v380 = vmax.f32 %v362, 0.0
  %v381 = vmax.f32 %v365, %v366
  %v382 = vmax.f32 %v367, %v368
  %v383 = vmax.f32 %v369, %v370
  %v384 = vmax.f32 %v371, %v372
  %v385 = vmax.f32 %v373, %v374
  %v386 = vmax.f32 %v375, %v376
  %v387 = vmax.f32 %v377, %v378
  %v388 = vmax.f32 %v379, %v380
  %397 = vrot.lane.b32.xlu0 %v381, 32
  %v398 = vpop.permute.xlu0 %397
  %399 = vrot.lane.b32.xlu0 %v382, 32
  %v400 = vpop.permute.xlu0 %399
  %401 = vrot.lane.b32.xlu0 %v383, 32
  %v402 = vpop.permute.xlu0 %401
  %403 = vrot.lane.b32.xlu0 %v384, 32
  %v404 = vpop.permute.xlu0 %403
  %405 = vrot.lane.b32.xlu0 %v385, 32
  %v406 = vpop.permute.xlu0 %405
  %407 = vrot.lane.b32.xlu0 %v386, 32
  %v408 = vpop.permute.xlu0 %407
  %409 = vrot.lane.b32.xlu0 %v387, 32
  %v410 = vpop.permute.xlu0 %409
  %411 = vrot.lane.b32.xlu0 %v388, 32
  %v412 = vpop.permute.xlu0 %411
  %421 = vrot.lane.b32.xlu0 %v382, 64
  %v422 = vpop.permute.xlu0 %421
  %423 = vrot.lane.b32.xlu0 %v383, 64
  %v424 = vpop.permute.xlu0 %423
  %425 = vrot.lane.b32.xlu0 %v384, 64
  %v426 = vpop.permute.xlu0 %425
  %427 = vrot.lane.b32.xlu0 %v385, 64
  %v428 = vpop.permute.xlu0 %427
  %429 = vrot.lane.b32.xlu0 %v386, 64
  %v430 = vpop.permute.xlu0 %429
  %431 = vrot.lane.b32.xlu0 %v387, 64
  %v432 = vpop.permute.xlu0 %431
  %433 = vrot.lane.b32.xlu0 %v388, 64
  %v434 = vpop.permute.xlu0 %433
  %435 = vrot.lane.b32.xlu0 0.0, 64
  %v436 = vpop.permute.xlu0 %435
  %vm445 = vcmask 261120
  %v446 = vsel %vm445, 0.0, %v398
  %v447 = vsel %vm445, %v381, %v400
  %v448 = vsel %vm445, %v382, %v402
  %v449 = vsel %vm445, %v383, %v404
  %v450 = vsel %vm445, %v384, %v406
  %v451 = vsel %vm445, %v385, %v408
  %v452 = vsel %vm445, %v386, %v410
  %v453 = vsel %vm445, %v387, %v412
  %vm454 = vcmask 523264
  %v455 = vsel %vm454, %v446, %v422
  %v456 = vsel %vm454, %v447, %v424
  %v457 = vsel %vm454, %v448, %v426
  %v458 = vsel %vm454, %v449, %v428
  %v459 = vsel %vm454, %v450, %v430
  %v460 = vsel %vm454, %v451, %v432
  %v461 = vsel %vm454, %v452, %v434
  %v462 = vsel %vm454, %v453, %v436
  %v463 = vpack.c.bf16 %v456, %v455
  %v464 = vpack.c.bf16 %v458, %v457
  %v465 = vpack.c.bf16 %v460, %v459
  %v466 = vpack.c.bf16 %v462, %v461
  %v467 = vld [vmem:[%s4] sm:$0xf]
  %v468 = vld [vmem:[%s4 + $0x4] sm:$0xf]
  %v469 = vld [vmem:[%s4 + $0x8] sm:$0xf]
  %v470 = vld [vmem:[%s4 + $0xc] sm:$0xf]
  %v471 = vld [vmem:[%s4 + $0x10] sm:$0xf]
  %v472 = vld [vmem:[%s4 + $0x14] sm:$0xf]
  %v473 = vld [vmem:[%s4 + $0x18] sm:$0xf]
  %v474 = vld [vmem:[%s4 + $0x1c] sm:$0xf]
  %v475 = vld [vmem:[%s4 + $0x20] sm:$0xf]
  %v476 = vld [vmem:[%s4 + $0x24] sm:$0xf]
  %v477 = vld [vmem:[%s4 + $0x28] sm:$0xf]
  %v478 = vld [vmem:[%s4 + $0x2c] sm:$0xf]
  %v479 = vld [vmem:[%s5] sm:$0x1]
  %v481 = vlaneseq
  %v482 = vshrl.u32 %v481, 7
  %v483 = vsub.s32 0, %v482
  %v484 = vrot.slane %v479, %v483
  %v498 = vunpack.c.l.b16 %v467
  %v499 = vunpack.c.l.b16 %v468
  %v500 = vunpack.c.l.b16 %v469
  %v501 = vunpack.c.l.b16 %v470
  %v502 = vunpack.c.l.b16 %v471
  %v503 = vunpack.c.l.b16 %v472
  %v504 = vunpack.c.l.b16 %v473
  %v505 = vunpack.c.l.b16 %v474
  %v506 = vunpack.c.l.b16 %v475
  %v507 = vunpack.c.l.b16 %v476
  %v508 = vunpack.c.l.b16 %v477
  %v509 = vunpack.c.l.b16 %v478
  %v510 = vpack.c.b16 %v499, %v498
  %v511 = vpack.c.b16 %v501, %v500
  %v512 = vpack.c.b16 %v503, %v502
  %v513 = vpack.c.b16 %v505, %v504
  %v514 = vpack.c.b16 %v507, %v506
  %v515 = vpack.c.b16 %v509, %v508
  %vm522 = vcmask 785408
  %v524 = vsel %vm522, %v463, 0
  %v527 = vsel %vm522, %v464, 0
  %v530 = vsel %vm522, %v465, 0
  %v533 = vsel %vm522, %v466, 0
  %535 = vmatprep.subr.bf16.mxu0 0
  %536 = vmatpush1.bf16.msra.mxu0 %v510
  %537 = vmatprep.subr.bf16.mxu0 0
  %538 = vmatpush1.bf16.msra.mxu0 %v511
  %539 = vmatprep.subr.bf16.mxu0 0
  %540 = vmatpush1.bf16.msra.mxu0 %v512
  %541 = vmatprep.subr.bf16.mxu0 0
  %542 = vmatpush1.bf16.msra.mxu0 %v513
  %543 = vmatprep.subr.bf16.mxu0 0
  %544 = vmatpush1.bf16.msra.mxu0 %v514
  %545 = vmatprep.subr.bf16.mxu0 0
  %546 = vmatpush1.bf16.msra.mxu0 %v515
  %547 = vmatprep.subr.bf16.mxu0 0
  %548 = vmatpush1.bf16.msra.mxu0 0
  %549 = vmatprep.subr.bf16.mxu0 0
  %550 = vmatpush1.bf16.msra.mxu0 0
  %551 = vmatprep.subr.bf16.mxu0 0
  %552 = vmatpush1.bf16.msra.mxu0 0
  %553 = vmatprep.subr.bf16.mxu0 0
  %554 = vmatpush1.bf16.msra.mxu0 0
  %555 = vmatprep.subr.bf16.mxu0 0
  %556 = vmatpush1.bf16.msra.mxu0 0
  %557 = vmatprep.subr.bf16.mxu0 0
  %558 = vmatpush1.bf16.msra.mxu0 0
  %559 = vmatprep.subr.bf16.mxu0 0
  %560 = vmatpush1.bf16.msra.mxu0 0
  %561 = vmatprep.subr.bf16.mxu0 0
  %562 = vmatpush1.bf16.msra.mxu0 0
  %563 = vmatprep.subr.bf16.mxu0 0
  %564 = vmatpush1.bf16.msra.mxu0 0
  %565 = vmatprep.subr.bf16.mxu0 0
  %566 = vmatpush1.bf16.msra.mxu0 0
  %567 = vmatprep.mubr.bf16.mxu0 0
  %568 = vmatmul.mubr.bf16.gmra.mrb[0].mxu0 %v524
  %v569 = vpop.f32.mrb[0].mxu0
  %v570 = vadd.f32 %v484, %v569
  %v571 = vpop.f32.mrb[0].mxu0
  %v572 = vpop.f32.mrb[0].mxu0
  %v573 = vadd.f32 %v484, %v572
  %v574 = vpop.f32.mrb[0].mxu0
  %575 = vmatprep.mubr.bf16.mxu0 0
  %576 = vmatmul.mubr.bf16.gmra.mrb[0].mxu0 %v527
  %v577 = vpop.f32.mrb[0].mxu0
  %v578 = vadd.f32 %v484, %v577
  %v579 = vpop.f32.mrb[0].mxu0
  %v580 = vpop.f32.mrb[0].mxu0
  %v581 = vadd.f32 %v484, %v580
  %v582 = vpop.f32.mrb[0].mxu0
  %583 = vmatprep.mubr.bf16.mxu0 0
  %584 = vmatmul.mubr.bf16.gmra.mrb[0].mxu0 %v530
  %v585 = vpop.f32.mrb[0].mxu0
  %v586 = vadd.f32 %v484, %v585
  %v587 = vpop.f32.mrb[0].mxu0
  %v588 = vpop.f32.mrb[0].mxu0
  %v589 = vadd.f32 %v484, %v588
  %v590 = vpop.f32.mrb[0].mxu0
  %591 = vmatprep.mubr.bf16.mxu0 0
  %592 = vmatmul.mubr.bf16.gmra.mrb[0].mxu0 %v533
  %v593 = vpop.f32.mrb[0].mxu0
  %v594 = vadd.f32 %v484, %v593
  %v595 = vpop.f32.mrb[0].mxu0
  %v596 = vpop.f32.mrb[0].mxu0
  %v597 = vadd.f32 %v484, %v596
  %v598 = vpop.f32.mrb[0].mxu0
  %599 = vdwg.mxu0
  %v600 = vmax.f32 %v570, 0.0
  %v601 = vmax.f32 %v573, 0.0
  %v602 = vmax.f32 %v578, 0.0
  %v603 = vmax.f32 %v581, 0.0
  %v604 = vmax.f32 %v586, 0.0
  %v605 = vmax.f32 %v589, 0.0
  %v606 = vmax.f32 %v594, 0.0
  %v607 = vmax.f32 %v597, 0.0
  %v608 = vmax.f32 %v600, %v601
  %v609 = vmax.f32 %v602, %v603
  %v610 = vmax.f32 %v604, %v605
  %v611 = vmax.f32 %v606, %v607
  %v612 = vld [vmem:[%s1] sm:$0xff]
  %v613 = vpack.c.bf16 %v612, %v612
  %v614 = vld [vmem:[%s6] sm:$0xf]
  %v615 = vld [vmem:[%s7] sm:$0x1]
  %v617 = vlaneseq
  %v618 = vshrl.u32 %v617, 7
  %v619 = vsub.s32 0, %v618
  %v620 = vrot.slane %v615, %v619
  %vm622 = vcmask 64512
  %v624 = vsel %vm622, %v613, 0
  %v627 = vsel %vm261, %v614, 0
  %629 = vmatprep.subr.bf16.mxu0 0
  %630 = vmatpush1.bf16.msra.mxu0 %v627
  %631 = vmatprep.subr.bf16.mxu0 0
  %632 = vmatpush1.bf16.msra.mxu0 0
  %633 = vmatprep.subr.bf16.mxu0 0
  %634 = vmatpush1.bf16.msra.mxu0 0
  %635 = vmatprep.subr.bf16.mxu0 0
  %636 = vmatpush1.bf16.msra.mxu0 0
  %637 = vmatprep.subr.bf16.mxu0 0
  %638 = vmatpush1.bf16.msra.mxu0 0
  %639 = vmatprep.subr.bf16.mxu0 0
  %640 = vmatpush1.bf16.msra.mxu0 0
  %641 = vmatprep.subr.bf16.mxu0 0
  %642 = vmatpush1.bf16.msra.mxu0 0
  %643 = vmatprep.subr.bf16.mxu0 0
  %644 = vmatpush1.bf16.msra.mxu0 0
  %645 = vmatprep.subr.bf16.mxu0 0
  %646 = vmatpush1.bf16.msra.mxu0 0
  %647 = vmatprep.subr.bf16.mxu0 0
  %648 = vmatpush1.bf16.msra.mxu0 0
  %649 = vmatprep.subr.bf16.mxu0 0
  %650 = vmatpush1.bf16.msra.mxu0 0
  %651 = vmatprep.subr.bf16.mxu0 0
  %652 = vmatpush1.bf16.msra.mxu0 0
  %653 = vmatprep.subr.bf16.mxu0 0
  %654 = vmatpush1.bf16.msra.mxu0 0
  %655 = vmatprep.subr.bf16.mxu0 0
  %656 = vmatpush1.bf16.msra.mxu0 0
  %657 = vmatprep.subr.bf16.mxu0 0
  %658 = vmatpush1.bf16.msra.mxu0 0
  %659 = vmatprep.subr.bf16.mxu0 0
  %660 = vmatpush1.bf16.msra.mxu0 0
  %661 = vmatprep.mubr.bf16.mxu0 0
  %662 = vmatmul.mubr.bf16.gmra.mrb[0].mxu0 %v624
  %v663 = vpop.f32.mrb[0].mxu0
  %v664 = vadd.f32 %v620, %v663
  %v665 = vpop.f32.mrb[0].mxu0
  %v666 = vpop.f32.mrb[0].mxu0
  %v667 = vpop.f32.mrb[0].mxu0
  %668 = vdwg.mxu0
  %v669 = vmax.f32 %v664, 0.0
  %v670 = vpack.c.bf16 %v669, %v669
  %v671 = vld [vmem:[%s8] sm:$0xf]
  %v672 = vld [vmem:[%s8 + $0x4] sm:$0xf]
  %v673 = vld [vmem:[%s8 + $0x8] sm:$0xf]
  %v674 = vld [vmem:[%s8 + $0xc] sm:$0xf]
  %v675 = vld [vmem:[%s8 + $0x10] sm:$0xf]
  %v676 = vld [vmem:[%s8 + $0x14] sm:$0xf]
  %v677 = vld [vmem:[%s8 + $0x18] sm:$0xf]
  %v678 = vld [vmem:[%s8 + $0x1c] sm:$0xf]
  %v679 = vld [vmem:[%s9] sm:$0x1]
  %v681 = vlaneseq
  %v682 = vshrl.u32 %v681, 7
  %v683 = vsub.s32 0, %v682
  %v684 = vrot.slane %v679, %v683
  %v694 = vunpack.c.l.b16 %v671
  %v695 = vunpack.c.l.b16 %v672
  %v696 = vunpack.c.l.b16 %v673
  %v697 = vunpack.c.l.b16 %v674
  %v698 = vunpack.c.l.b16 %v675
  %v699 = vunpack.c.l.b16 %v676
  %v700 = vunpack.c.l.b16 %v677
  %v701 = vunpack.c.l.b16 %v678
  %v702 = vpack.c.b16 %v695, %v694
  %v703 = vpack.c.b16 %v697, %v696
  %v704 = vpack.c.b16 %v699, %v698
  %v705 = vpack.c.b16 %v701, %v700
  %v711 = vsel %vm454, %v670, 0
  %713 = vmatprep.subr.bf16.mxu0 0
  %714 = vmatpush1.bf16.msra.mxu0 %v702
  %715 = vmatprep.subr.bf16.mxu0 0
  %716 = vmatpush1.bf16.msra.mxu0 %v703
  %717 = vmatprep.subr.bf16.mxu0 0
  %718 = vmatpush1.bf16.msra.mxu0 %v704
  %719 = vmatprep.subr.bf16.mxu0 0
  %720 = vmatpush1.bf16.msra.mxu0 %v705
  %721 = vmatprep.subr.bf16.mxu0 0
  %722 = vmatpush1.bf16.msra.mxu0 0
  %723 = vmatprep.subr.bf16.mxu0 0
  %724 = vmatpush1.bf16.msra.mxu0 0
  %725 = vmatprep.subr.bf16.mxu0 0
  %726 = vmatpush1.bf16.msra.mxu0 0
  %727 = vmatprep.subr.bf16.mxu0 0
  %728 = vmatpush1.bf16.msra.mxu0 0
  %729 = vmatprep.subr.bf16.mxu0 0
  %730 = vmatpush1.bf16.msra.mxu0 0
  %731 = vmatprep.subr.bf16.mxu0 0
  %732 = vmatpush1.bf16.msra.mxu0 0
  %733 = vmatprep.subr.bf16.mxu0 0
  %734 = vmatpush1.bf16.msra.mxu0 0
  %735 = vmatprep.subr.bf16.mxu0 0
  %736 = vmatpush1.bf16.msra.mxu0 0
  %737 = vmatprep.subr.bf16.mxu0 0
  %738 = vmatpush1.bf16.msra.mxu0 0
  %739 = vmatprep.subr.bf16.mxu0 0
  %740 = vmatpush1.bf16.msra.mxu0 0
  %741 = vmatprep.subr.bf16.mxu0 0
  %742 = vmatpush1.bf16.msra.mxu0 0
  %743 = vmatprep.subr.bf16.mxu0 0
  %744 = vmatpush1.bf16.msra.mxu0 0
  %745 = vmatprep.mubr.bf16.mxu0 0
  %746 = vmatmul.mubr.bf16.gmra.mrb[0].mxu0 %v711
  %v747 = vpop.f32.mrb[0].mxu0
  %v748 = vadd.f32 %v684, %v747
  %v749 = vpop.f32.mrb[0].mxu0
  %v750 = vpop.f32.mrb[0].mxu0
  %v751 = vpop.f32.mrb[0].mxu0
  %752 = vdwg.mxu0
  %v753 = vmax.f32 %v748, 0.0
  %v754 = vpack.c.bf16 %v753, %v753
  %v755 = vld [vmem:[%s11] sm:$0xf]
  %v756 = vld [vmem:[%s11 + $0x4] sm:$0xf]
  %v757 = vld [vmem:[%s11 + $0x8] sm:$0xf]
  %v758 = vld [vmem:[%s11 + $0xc] sm:$0xf]
  %v759 = vld [vmem:[%s11 + $0x10] sm:$0xf]
  %v760 = vld [vmem:[%s11 + $0x14] sm:$0xf]
  %v761 = vld [vmem:[%s11 + $0x18] sm:$0xf]
  %v762 = vld [vmem:[%s11 + $0x1c] sm:$0xf]
  %v763 = vpack.c.bf16 %v608, %v608
  %v764 = vld [vmem:[%s10] sm:$0xf]
  %v765 = vld [vmem:[%s10 + $0x4] sm:$0xf]
  %v766 = vld [vmem:[%s10 + $0x8] sm:$0xf]
  %v767 = vld [vmem:[%s10 + $0xc] sm:$0xf]
  %v768 = vld [vmem:[%s10 + $0x10] sm:$0xf]
  %v769 = vld [vmem:[%s10 + $0x14] sm:$0xf]
  %v770 = vld [vmem:[%s10 + $0x18] sm:$0xf]
  %v771 = vld [vmem:[%s10 + $0x1c] sm:$0xf]
  %v780 = vunpack.c.l.b16 %v764
  %v781 = vunpack.c.l.b16 %v765
  %v782 = vunpack.c.l.b16 %v766
  %v783 = vunpack.c.l.b16 %v767
  %v784 = vunpack.c.l.b16 %v768
  %v785 = vunpack.c.l.b16 %v769
  %v786 = vunpack.c.l.b16 %v770
  %v787 = vunpack.c.l.b16 %v771
  %v788 = vpack.c.b16 %v781, %v780
  %v789 = vpack.c.b16 %v783, %v782
  %v790 = vpack.c.b16 %v785, %v784
  %v791 = vpack.c.b16 %v787, %v786
  %v797 = vsel %vm454, %v763, 0
  %799 = vmatprep.subr.bf16.mxu0 0
  %800 = vmatpush1.bf16.msra.mxu0 %v788
  %801 = vmatprep.subr.bf16.mxu0 0
  %802 = vmatpush1.bf16.msra.mxu0 %v789
  %803 = vmatprep.subr.bf16.mxu0 0
  %804 = vmatpush1.bf16.msra.mxu0 %v790
  %805 = vmatprep.subr.bf16.mxu0 0
  %806 = vmatpush1.bf16.msra.mxu0 %v791
  %807 = vmatprep.subr.bf16.mxu0 0
  %808 = vmatpush1.bf16.msra.mxu0 0
  %809 = vmatprep.subr.bf16.mxu0 0
  %810 = vmatpush1.bf16.msra.mxu0 0
  %811 = vmatprep.subr.bf16.mxu0 0
  %812 = vmatpush1.bf16.msra.mxu0 0
  %813 = vmatprep.subr.bf16.mxu0 0
  %814 = vmatpush1.bf16.msra.mxu0 0
  %815 = vmatprep.subr.bf16.mxu0 0
  %816 = vmatpush1.bf16.msra.mxu0 0
  %817 = vmatprep.subr.bf16.mxu0 0
  %818 = vmatpush1.bf16.msra.mxu0 0
  %819 = vmatprep.subr.bf16.mxu0 0
  %820 = vmatpush1.bf16.msra.mxu0 0
  %821 = vmatprep.subr.bf16.mxu0 0
  %822 = vmatpush1.bf16.msra.mxu0 0
  %823 = vmatprep.subr.bf16.mxu0 0
  %824 = vmatpush1.bf16.msra.mxu0 0
  %825 = vmatprep.subr.bf16.mxu0 0
  %826 = vmatpush1.bf16.msra.mxu0 0
  %827 = vmatprep.subr.bf16.mxu0 0
  %828 = vmatpush1.bf16.msra.mxu0 0
  %829 = vmatprep.subr.bf16.mxu0 0
  %830 = vmatpush1.bf16.msra.mxu0 0
  %831 = vmatprep.mubr.bf16.mxu0 0
  %832 = vmatmul.mubr.bf16.gmra.mrb[0].mxu0 %v797
  %v833 = vpop.f32.mrb[0].mxu0
  %v834 = vadd.f32 0.0, %v833
  %v835 = vpop.f32.mrb[0].mxu0
  %v836 = vpop.f32.mrb[0].mxu0
  %v837 = vpop.f32.mrb[0].mxu0
  %838 = vdwg.mxu0
  %v847 = vunpack.c.l.b16 %v755
  %v848 = vunpack.c.l.b16 %v756
  %v849 = vunpack.c.l.b16 %v757
  %v850 = vunpack.c.l.b16 %v758
  %v851 = vunpack.c.l.b16 %v759
  %v852 = vunpack.c.l.b16 %v760
  %v853 = vunpack.c.l.b16 %v761
  %v854 = vunpack.c.l.b16 %v762
  %v855 = vpack.c.b16 %v848, %v847
  %v856 = vpack.c.b16 %v850, %v849
  %v857 = vpack.c.b16 %v852, %v851
  %v858 = vpack.c.b16 %v854, %v853
  %v864 = vsel %vm454, %v754, 0
  %866 = vmatprep.subr.bf16.mxu0 0
  %867 = vmatpush1.bf16.msra.mxu0 %v855
  %868 = vmatprep.subr.bf16.mxu0 0
  %869 = vmatpush1.bf16.msra.mxu0 %v856
  %870 = vmatprep.subr.bf16.mxu0 0
  %871 = vmatpush1.bf16.msra.mxu0 %v857
  %872 = vmatprep.subr.bf16.mxu0 0
  %873 = vmatpush1.bf16.msra.mxu0 %v858
  %874 = vmatprep.subr.bf16.mxu0 0
  %875 = vmatpush1.bf16.msra.mxu0 0
  %876 = vmatprep.subr.bf16.mxu0 0
  %877 = vmatpush1.bf16.msra.mxu0 0
  %878 = vmatprep.subr.bf16.mxu0 0
  %879 = vmatpush1.bf16.msra.mxu0 0
  %880 = vmatprep.subr.bf16.mxu0 0
  %881 = vmatpush1.bf16.msra.mxu0 0
  %882 = vmatprep.subr.bf16.mxu0 0
  %883 = vmatpush1.bf16.msra.mxu0 0
  %884 = vmatprep.subr.bf16.mxu0 0
  %885 = vmatpush1.bf16.msra.mxu0 0
  %886 = vmatprep.subr.bf16.mxu0 0
  %887 = vmatpush1.bf16.msra.mxu0 0
  %888 = vmatprep.subr.bf16.mxu0 0
  %889 = vmatpush1.bf16.msra.mxu0 0
  %890 = vmatprep.subr.bf16.mxu0 0
  %891 = vmatpush1.bf16.msra.mxu0 0
  %892 = vmatprep.subr.bf16.mxu0 0
  %893 = vmatpush1.bf16.msra.mxu0 0
  %894 = vmatprep.subr.bf16.mxu0 0
  %895 = vmatpush1.bf16.msra.mxu0 0
  %896 = vmatprep.subr.bf16.mxu0 0
  %897 = vmatpush1.bf16.msra.mxu0 0
  %898 = vmatprep.mubr.bf16.mxu0 0
  %899 = vmatmul.mubr.bf16.gmra.mrb[0].mxu0 %v864
  %v900 = vpop.f32.mrb[0].mxu0
  %v901 = vadd.f32 %v834, %v900
  %v902 = vpop.f32.mrb[0].mxu0
  %v903 = vpop.f32.mrb[0].mxu0
  %v904 = vpop.f32.mrb[0].mxu0
  %905 = vdwg.mxu0
  %v906 = vpack.c.bf16 %v609, %v609
  %s907 = scalar_lea.vmem %s10, 32
  %v908 = vld [vmem:[%s907] sm:$0xf]
  %v909 = vld [vmem:[%s907 + $0x4] sm:$0xf]
  %v910 = vld [vmem:[%s907 + $0x8] sm:$0xf]
  %v911 = vld [vmem:[%s907 + $0xc] sm:$0xf]
  %v912 = vld [vmem:[%s907 + $0x10] sm:$0xf]
  %v913 = vld [vmem:[%s907 + $0x14] sm:$0xf]
  %v914 = vld [vmem:[%s907 + $0x18] sm:$0xf]
  %v915 = vld [vmem:[%s907 + $0x1c] sm:$0xf]
  %v924 = vunpack.c.l.b16 %v908
  %v925 = vunpack.c.l.b16 %v909
  %v926 = vunpack.c.l.b16 %v910
  %v927 = vunpack.c.l.b16 %v911
  %v928 = vunpack.c.l.b16 %v912
  %v929 = vunpack.c.l.b16 %v913
  %v930 = vunpack.c.l.b16 %v914
  %v931 = vunpack.c.l.b16 %v915
  %v932 = vpack.c.b16 %v925, %v924
  %v933 = vpack.c.b16 %v927, %v926
  %v934 = vpack.c.b16 %v929, %v928
  %v935 = vpack.c.b16 %v931, %v930
  %v941 = vsel %vm454, %v906, 0
  %943 = vmatprep.subr.bf16.mxu0 0
  %944 = vmatpush1.bf16.msra.mxu0 %v932
  %945 = vmatprep.subr.bf16.mxu0 0
  %946 = vmatpush1.bf16.msra.mxu0 %v933
  %947 = vmatprep.subr.bf16.mxu0 0
  %948 = vmatpush1.bf16.msra.mxu0 %v934
  %949 = vmatprep.subr.bf16.mxu0 0
  %950 = vmatpush1.bf16.msra.mxu0 %v935
  %951 = vmatprep.subr.bf16.mxu0 0
  %952 = vmatpush1.bf16.msra.mxu0 0
  %953 = vmatprep.subr.bf16.mxu0 0
  %954 = vmatpush1.bf16.msra.mxu0 0
  %955 = vmatprep.subr.bf16.mxu0 0
  %956 = vmatpush1.bf16.msra.mxu0 0
  %957 = vmatprep.subr.bf16.mxu0 0
  %958 = vmatpush1.bf16.msra.mxu0 0
  %959 = vmatprep.subr.bf16.mxu0 0
  %960 = vmatpush1.bf16.msra.mxu0 0
  %961 = vmatprep.subr.bf16.mxu0 0
  %962 = vmatpush1.bf16.msra.mxu0 0
  %963 = vmatprep.subr.bf16.mxu0 0
  %964 = vmatpush1.bf16.msra.mxu0 0
  %965 = vmatprep.subr.bf16.mxu0 0
  %966 = vmatpush1.bf16.msra.mxu0 0
  %967 = vmatprep.subr.bf16.mxu0 0
  %968 = vmatpush1.bf16.msra.mxu0 0
  %969 = vmatprep.subr.bf16.mxu0 0
  %970 = vmatpush1.bf16.msra.mxu0 0
  %971 = vmatprep.subr.bf16.mxu0 0
  %972 = vmatpush1.bf16.msra.mxu0 0
  %973 = vmatprep.subr.bf16.mxu0 0
  %974 = vmatpush1.bf16.msra.mxu0 0
  %975 = vmatprep.mubr.bf16.mxu0 0
  %976 = vmatmul.mubr.bf16.gmra.mrb[0].mxu0 %v941
  %v977 = vpop.f32.mrb[0].mxu0
  %v978 = vadd.f32 0.0, %v977
  %v979 = vpop.f32.mrb[0].mxu0
  %v980 = vpop.f32.mrb[0].mxu0
  %v981 = vpop.f32.mrb[0].mxu0
  %982 = vdwg.mxu0
  %v983 = vadd.f32 %v901, %v978
  %v984 = vpack.c.bf16 %v610, %v610
  %s985 = scalar_lea.vmem %s10, 64
  %v986 = vld [vmem:[%s985] sm:$0xf]
  %v987 = vld [vmem:[%s985 + $0x4] sm:$0xf]
  %v988 = vld [vmem:[%s985 + $0x8] sm:$0xf]
  %v989 = vld [vmem:[%s985 + $0xc] sm:$0xf]
  %v990 = vld [vmem:[%s985 + $0x10] sm:$0xf]
  %v991 = vld [vmem:[%s985 + $0x14] sm:$0xf]
  %v992 = vld [vmem:[%s985 + $0x18] sm:$0xf]
  %v993 = vld [vmem:[%s985 + $0x1c] sm:$0xf]
  %v1002 = vunpack.c.l.b16 %v986
  %v1003 = vunpack.c.l.b16 %v987
  %v1004 = vunpack.c.l.b16 %v988
  %v1005 = vunpack.c.l.b16 %v989
  %v1006 = vunpack.c.l.b16 %v990
  %v1007 = vunpack.c.l.b16 %v991
  %v1008 = vunpack.c.l.b16 %v992
  %v1009 = vunpack.c.l.b16 %v993
  %v1010 = vpack.c.b16 %v1003, %v1002
  %v1011 = vpack.c.b16 %v1005, %v1004
  %v1012 = vpack.c.b16 %v1007, %v1006
  %v1013 = vpack.c.b16 %v1009, %v1008
  %v1019 = vsel %vm454, %v984, 0
  %1021 = vmatprep.subr.bf16.mxu0 0
  %1022 = vmatpush1.bf16.msra.mxu0 %v1010
  %1023 = vmatprep.subr.bf16.mxu0 0
  %1024 = vmatpush1.bf16.msra.mxu0 %v1011
  %1025 = vmatprep.subr.bf16.mxu0 0
  %1026 = vmatpush1.bf16.msra.mxu0 %v1012
  %1027 = vmatprep.subr.bf16.mxu0 0
  %1028 = vmatpush1.bf16.msra.mxu0 %v1013
  %1029 = vmatprep.subr.bf16.mxu0 0
  %1030 = vmatpush1.bf16.msra.mxu0 0
  %1031 = vmatprep.subr.bf16.mxu0 0
  %1032 = vmatpush1.bf16.msra.mxu0 0
  %1033 = vmatprep.subr.bf16.mxu0 0
  %1034 = vmatpush1.bf16.msra.mxu0 0
  %1035 = vmatprep.subr.bf16.mxu0 0
  %1036 = vmatpush1.bf16.msra.mxu0 0
  %1037 = vmatprep.subr.bf16.mxu0 0
  %1038 = vmatpush1.bf16.msra.mxu0 0
  %1039 = vmatprep.subr.bf16.mxu0 0
  %1040 = vmatpush1.bf16.msra.mxu0 0
  %1041 = vmatprep.subr.bf16.mxu0 0
  %1042 = vmatpush1.bf16.msra.mxu0 0
  %1043 = vmatprep.subr.bf16.mxu0 0
  %1044 = vmatpush1.bf16.msra.mxu0 0
  %1045 = vmatprep.subr.bf16.mxu0 0
  %1046 = vmatpush1.bf16.msra.mxu0 0
  %1047 = vmatprep.subr.bf16.mxu0 0
  %1048 = vmatpush1.bf16.msra.mxu0 0
  %1049 = vmatprep.subr.bf16.mxu0 0
  %1050 = vmatpush1.bf16.msra.mxu0 0
  %1051 = vmatprep.subr.bf16.mxu0 0
  %1052 = vmatpush1.bf16.msra.mxu0 0
  %1053 = vmatprep.mubr.bf16.mxu0 0
  %1054 = vmatmul.mubr.bf16.gmra.mrb[0].mxu0 %v1019
  %v1055 = vpop.f32.mrb[0].mxu0
  %v1056 = vadd.f32 0.0, %v1055
  %v1057 = vpop.f32.mrb[0].mxu0
  %v1058 = vpop.f32.mrb[0].mxu0
  %v1059 = vpop.f32.mrb[0].mxu0
  %1060 = vdwg.mxu0
  %v1061 = vadd.f32 %v983, %v1056
  %v1062 = vpack.c.bf16 %v611, %v611
  %s1063 = scalar_lea.vmem %s10, 96
  %v1064 = vld [vmem:[%s1063] sm:$0xf]
  %v1065 = vld [vmem:[%s1063 + $0x4] sm:$0xf]
  %v1066 = vld [vmem:[%s1063 + $0x8] sm:$0xf]
  %v1067 = vld [vmem:[%s1063 + $0xc] sm:$0xf]
  %v1068 = vld [vmem:[%s1063 + $0x10] sm:$0xf]
  %v1069 = vld [vmem:[%s1063 + $0x14] sm:$0xf]
  %v1070 = vld [vmem:[%s1063 + $0x18] sm:$0xf]
  %v1071 = vld [vmem:[%s1063 + $0x1c] sm:$0xf]
  %v1080 = vunpack.c.l.b16 %v1064
  %v1081 = vunpack.c.l.b16 %v1065
  %v1082 = vunpack.c.l.b16 %v1066
  %v1083 = vunpack.c.l.b16 %v1067
  %v1084 = vunpack.c.l.b16 %v1068
  %v1085 = vunpack.c.l.b16 %v1069
  %v1086 = vunpack.c.l.b16 %v1070
  %v1087 = vunpack.c.l.b16 %v1071
  %v1088 = vpack.c.b16 %v1081, %v1080
  %v1089 = vpack.c.b16 %v1083, %v1082
  %v1090 = vpack.c.b16 %v1085, %v1084
  %v1091 = vpack.c.b16 %v1087, %v1086
  %v1097 = vsel %vm454, %v1062, 0
  %1099 = vmatprep.subr.bf16.mxu0 0
  %1100 = vmatpush1.bf16.msra.mxu0 %v1088
  %1101 = vmatprep.subr.bf16.mxu0 0
  %1102 = vmatpush1.bf16.msra.mxu0 %v1089
  %1103 = vmatprep.subr.bf16.mxu0 0
  %1104 = vmatpush1.bf16.msra.mxu0 %v1090
  %1105 = vmatprep.subr.bf16.mxu0 0
  %1106 = vmatpush1.bf16.msra.mxu0 %v1091
  %1107 = vmatprep.subr.bf16.mxu0 0
  %1108 = vmatpush1.bf16.msra.mxu0 0
  %1109 = vmatprep.subr.bf16.mxu0 0
  %1110 = vmatpush1.bf16.msra.mxu0 0
  %1111 = vmatprep.subr.bf16.mxu0 0
  %1112 = vmatpush1.bf16.msra.mxu0 0
  %1113 = vmatprep.subr.bf16.mxu0 0
  %1114 = vmatpush1.bf16.msra.mxu0 0
  %1115 = vmatprep.subr.bf16.mxu0 0
  %1116 = vmatpush1.bf16.msra.mxu0 0
  %1117 = vmatprep.subr.bf16.mxu0 0
  %1118 = vmatpush1.bf16.msra.mxu0 0
  %1119 = vmatprep.subr.bf16.mxu0 0
  %1120 = vmatpush1.bf16.msra.mxu0 0
  %1121 = vmatprep.subr.bf16.mxu0 0
  %1122 = vmatpush1.bf16.msra.mxu0 0
  %1123 = vmatprep.subr.bf16.mxu0 0
  %1124 = vmatpush1.bf16.msra.mxu0 0
  %1125 = vmatprep.subr.bf16.mxu0 0
  %1126 = vmatpush1.bf16.msra.mxu0 0
  %1127 = vmatprep.subr.bf16.mxu0 0
  %1128 = vmatpush1.bf16.msra.mxu0 0
  %1129 = vmatprep.subr.bf16.mxu0 0
  %1130 = vmatpush1.bf16.msra.mxu0 0
  %1131 = vmatprep.mubr.bf16.mxu0 0
  %1132 = vmatmul.mubr.bf16.gmra.mrb[0].mxu0 %v1097
  %v1133 = vpop.f32.mrb[0].mxu0
  %v1134 = vadd.f32 0.0, %v1133
  %v1135 = vpop.f32.mrb[0].mxu0
  %v1136 = vpop.f32.mrb[0].mxu0
  %v1137 = vpop.f32.mrb[0].mxu0
  %1138 = vdwg.mxu0
  %v1139 = vadd.f32 %v1061, %v1134
  %v1140 = vld [vmem:[%s12] sm:$0x1]
  %v1142 = vlaneseq
  %v1143 = vshrl.u32 %v1142, 7
  %v1144 = vsub.s32 0, %v1143
  %v1145 = vrot.slane %v1140, %v1144
  %v1147 = vadd.f32 %v1139, %v1145
  %v1148 = vmax.f32 %v1147, 0.0
  %v1149 = vpack.c.bf16 %v1148, %v1148
  %v1150 = vld [vmem:[%s13] sm:$0xf]
  %v1151 = vld [vmem:[%s13 + $0x4] sm:$0xf]
  %v1152 = vld [vmem:[%s13 + $0x8] sm:$0xf]
  %v1153 = vld [vmem:[%s13 + $0xc] sm:$0xf]
  %v1154 = vld [vmem:[%s13 + $0x10] sm:$0xf]
  %v1155 = vld [vmem:[%s13 + $0x14] sm:$0xf]
  %v1156 = vld [vmem:[%s13 + $0x18] sm:$0xf]
  %v1157 = vld [vmem:[%s13 + $0x1c] sm:$0xf]
  %v1158 = vld [vmem:[%s13 + $0x20] sm:$0xf]
  %v1159 = vld [vmem:[%s13 + $0x24] sm:$0xf]
  %v1160 = vld [vmem:[%s13 + $0x28] sm:$0xf]
  %v1161 = vld [vmem:[%s13 + $0x2c] sm:$0xf]
  %v1162 = vld [vmem:[%s13 + $0x30] sm:$0xf]
  %v1163 = vld [vmem:[%s13 + $0x34] sm:$0xf]
  %v1164 = vld [vmem:[%s13 + $0x38] sm:$0xf]
  %v1165 = vld [vmem:[%s13 + $0x3c] sm:$0xf]
  %v1166 = vld [vmem:[%s14] sm:$0x1]
  %v1168 = vlaneseq
  %v1169 = vshrl.u32 %v1168, 7
  %v1170 = vsub.s32 0, %v1169
  %v1171 = vrot.slane %v1166, %v1170
  %v1189 = vunpack.c.l.b16 %v1150
  %v1190 = vunpack.c.l.b16 %v1151
  %v1191 = vunpack.c.l.b16 %v1152
  %v1192 = vunpack.c.l.b16 %v1153
  %v1193 = vunpack.c.l.b16 %v1154
  %v1194 = vunpack.c.l.b16 %v1155
  %v1195 = vunpack.c.l.b16 %v1156
  %v1196 = vunpack.c.l.b16 %v1157
  %v1197 = vunpack.c.l.b16 %v1158
  %v1198 = vunpack.c.l.b16 %v1159
  %v1199 = vunpack.c.l.b16 %v1160
  %v1200 = vunpack.c.l.b16 %v1161
  %v1201 = vunpack.c.l.b16 %v1162
  %v1202 = vunpack.c.l.b16 %v1163
  %v1203 = vunpack.c.l.b16 %v1164
  %v1204 = vunpack.c.l.b16 %v1165
  %v1205 = vpack.c.b16 %v1190, %v1189
  %v1206 = vpack.c.b16 %v1192, %v1191
  %v1207 = vpack.c.b16 %v1194, %v1193
  %v1208 = vpack.c.b16 %v1196, %v1195
  %v1209 = vpack.c.b16 %v1198, %v1197
  %v1210 = vpack.c.b16 %v1200, %v1199
  %v1211 = vpack.c.b16 %v1202, %v1201
  %v1212 = vpack.c.b16 %v1204, %v1203
  %1221 = vmatprep.subr.bf16.mxu0 0
  %1222 = vmatpush1.bf16.msra.mxu0 %v1205
  %1223 = vmatprep.subr.bf16.mxu0 0
  %1224 = vmatpush1.bf16.msra.mxu0 %v1206
  %1225 = vmatprep.subr.bf16.mxu0 0
  %1226 = vmatpush1.bf16.msra.mxu0 %v1207
  %1227 = vmatprep.subr.bf16.mxu0 0
  %1228 = vmatpush1.bf16.msra.mxu0 %v1208
  %1229 = vmatprep.subr.bf16.mxu0 0
  %1230 = vmatpush1.bf16.msra.mxu0 %v1209
  %1231 = vmatprep.subr.bf16.mxu0 0
  %1232 = vmatpush1.bf16.msra.mxu0 %v1210
  %1233 = vmatprep.subr.bf16.mxu0 0
  %1234 = vmatpush1.bf16.msra.mxu0 %v1211
  %1235 = vmatprep.subr.bf16.mxu0 0
  %1236 = vmatpush1.bf16.msra.mxu0 %v1212
  %1237 = vmatprep.subr.bf16.mxu0 0
  %1238 = vmatpush1.bf16.msra.mxu0 0
  %1239 = vmatprep.subr.bf16.mxu0 0
  %1240 = vmatpush1.bf16.msra.mxu0 0
  %1241 = vmatprep.subr.bf16.mxu0 0
  %1242 = vmatpush1.bf16.msra.mxu0 0
  %1243 = vmatprep.subr.bf16.mxu0 0
  %1244 = vmatpush1.bf16.msra.mxu0 0
  %1245 = vmatprep.subr.bf16.mxu0 0
  %1246 = vmatpush1.bf16.msra.mxu0 0
  %1247 = vmatprep.subr.bf16.mxu0 0
  %1248 = vmatpush1.bf16.msra.mxu0 0
  %1249 = vmatprep.subr.bf16.mxu0 0
  %1250 = vmatpush1.bf16.msra.mxu0 0
  %1251 = vmatprep.subr.bf16.mxu0 0
  %1252 = vmatpush1.bf16.msra.mxu0 0
  %1253 = vmatprep.mubr.bf16.mxu0 0
  %1254 = vmatmul.mubr.bf16.gmra.mrb[0].mxu0 %v1149
  %v1255 = vpop.f32.mrb[0].mxu0
  %v1256 = vadd.f32 %v1171, %v1255
  %v1257 = vpop.f32.mrb[0].mxu0
  %v1258 = vpop.f32.mrb[0].mxu0
  %v1259 = vpop.f32.mrb[0].mxu0
  %1260 = vdwg.mxu0
  %vm1261 = vcmask 15360
  %1262 = vst.msk [vmem:[%s15] sm:$0xff] %vm1261, %v1256
  // Predicated region
  $region62: #{dual_stream_forward.1} parent=0 // pred_check
    _
  $region63: #{dual_stream_forward.1} parent=0 // pred_check_branch
    %1264 = sbr.rel (0) target = $region65
  $region64: #{dual_stream_forward.1} parent=0 // pred_region
    _
  $region65: #{dual_stream_forward.1} parent=0 // pred_fallthru
    _
  // Predicated region
  $region66: #{dual_stream_forward.1} parent=0 // pred_check
    _
  $region67: #{dual_stream_forward.1} parent=0 // pred_check_branch
    %1266 = sbr.rel (0) target = $region69
  $region68: #{dual_stream_forward.1} parent=0 // pred_region
    _
  $region69: #{dual_stream_forward.1} parent=0 // pred_fallthru
    _

</llo_original>
